<compile_context>
chip_gen: v6e
topology: v6e:2x2x1
jax: 0.10.0
libtpu: 0.0.40
codegen_flags: <defaults>
</compile_context>

<pallas_src>
import numpy as np
import jax
import jax.numpy as jnp
from jax.experimental import pallas as pl
from jax.experimental.pallas import tpu as pltpu  # noqa: F401  (kept for VMEM scratch if ever needed)

HIDDEN_DIM = 256
NUM_CLASSES = 26
CIN, C1, C2 = 2, 16, 32
HW = 5            # spatial size implied by Flatten(32 * 5 * 5)
KS = 3            # conv kernel size
PAD = 1


# ----------------------------------------------------------------------------
# Fused Pallas kernel: the whole forward, batch-vectorized, four matmuls.
# ----------------------------------------------------------------------------
def _fused_cnn_kernel(x_ref,                        # (N, 50)   NCHW-flattened input
                      g1_ref, b1_ref,               # (50, 400), (1, 400)   conv1 (unrolled)
                      g2_ref, b2_ref,               # (400, 800), (1, 800)  conv2 (unrolled)
                      g3_ref, b3_ref,               # (800, 256), (1, 256)  fc1
                      g4_ref, b4_ref,               # (256, 26), (1, 26)    fc2
                      out_ref):                     # (N, 26) softmax probs
    # conv1 + ReLU  (padding / sliding window folded into g1)
    a1 = jnp.maximum(
        jnp.dot(x_ref[...], g1_ref[...], preferred_element_type=jnp.float32)
        + b1_ref[...], 0.0)                         # (N, 400)

    # conv2 + ReLU  (padding / sliding window / NCHW flatten folded into g2)
    a2 = jnp.maximum(
        jnp.dot(a1, g2_ref[...], preferred_element_type=jnp.float32)
        + b2_ref[...], 0.0)                         # (N, 800)

    # fc1 + ReLU — single K=800 matmul (no 25-way accumulation chain)
    h = jnp.maximum(
        jnp.dot(a2, g3_ref[...], preferred_element_type=jnp.float32)
        + b3_ref[...], 0.0)                         # (N, 256)

    # fc2 + softmax
    logits = jnp.dot(h, g4_ref[...], preferred_element_type=jnp.float32) + b4_ref[...]
    m = jnp.max(logits, axis=-1, keepdims=True)
    e = jnp.exp(logits - m)
    out_ref[...] = e / jnp.sum(e, axis=-1, keepdims=True)


# ----------------------------------------------------------------------------
# Wrapper
# ----------------------------------------------------------------------------
def _vmem_spec(shape):
    zeros = (0,) * len(shape)
    return pl.BlockSpec(shape, lambda: zeros)


@jax.jit
def cnn_forward(packed, x_nchw):
    # x: (N, 2, 5, 5) NCHW float32 (PyTorch convention).
    N, C, H, W = x_nchw.shape
    assert (C, H, W) == (CIN, HW, HW)
    x_flat = x_nchw.reshape(N, C * H * W)           # pure view; NCHW flatten order

    d_in = CIN * HW * HW                            # 50
    d_c1 = C1 * HW * HW                             # 400
    d_c2 = C2 * HW * HW                             # 800

    return pl.pallas_call(
        _fused_cnn_kernel,
        out_shape=jax.ShapeDtypeStruct((N, NUM_CLASSES), jnp.float32),
        in_specs=[
            _vmem_spec((N, d_in)),
            _vmem_spec((d_in, d_c1)), _vmem_spec((1, d_c1)),
            _vmem_spec((d_c1, d_c2)), _vmem_spec((1, d_c2)),
            _vmem_spec((d_c2, HIDDEN_DIM)), _vmem_spec((1, HIDDEN_DIM)),
            _vmem_spec((HIDDEN_DIM, NUM_CLASSES)), _vmem_spec((1, NUM_CLASSES)),
        ],
        out_specs=_vmem_spec((N, NUM_CLASSES)),
    )(x_flat,
      packed["g1"], packed["b1"],
      packed["g2"], packed["b2"],
      packed["g3"], packed["b3"],
      packed["g4"], packed["b4"])


# ----------------------------------------------------------------------------
# Parameters: PyTorch-layout init + one-time packing into kernel layout.
# ----------------------------------------------------------------------------
def init_params(key):
    ks = jax.random.split(key, 8)
    scale = 0.05
    return {
        # PyTorch Conv2d weight layout (O, C, kh, kw); Linear weights kept in
        # math layout (in, out) with the input index being the NCHW flatten
        # index c*25 + h*5 + w (i.e. torch_weight.T).
        "conv1_w": scale * jax.random.normal(ks[0], (C1, CIN, KS, KS), jnp.float32),
        "conv1_b": scale * jax.random.normal(ks[1], (C1,), jnp.float32),
        "conv2_w": scale * jax.random.normal(ks[2], (C2, C1, KS, KS), jnp.float32),
        "conv2_b": scale * jax.random.normal(ks[3], (C2,), jnp.float32),
        "fc1_w": scale * jax.random.normal(ks[4], (C2 * HW * HW, HIDDEN_DIM), jnp.float32),
        "fc1_b": scale * jax.random.normal(ks[5], (HIDDEN_DIM,), jnp.float32),
        "fc2_w": scale * jax.random.normal(ks[6], (HIDDEN_DIM, NUM_CLASSES), jnp.float32),
        "fc2_b": scale * jax.random.normal(ks[7], (NUM_CLASSES,), jnp.float32),
    }


def _conv3x3_as_dense(w_oihw):
    """Unroll a 3x3 / stride-1 / pad-1 conv on a 5x5 image into a dense matrix.

    Returns G of shape (Cin*25, Cout*25) such that out_flat = in_flat @ G,
    where in_flat / out_flat are the NCHW flattenings (index = c*25 + h*5 + w)
    of the 5x5 feature maps.  Zero padding is absorbed as missing taps.
    """
    w = np.asarray(w_oihw, dtype=np.float32)        # (O, C, 3, 3)
    o_ch, c_ch = w.shape[0], w.shape[1]
    G = np.zeros((c_ch * HW * HW, o_ch * HW * HW), np.float32)
    in_base = np.arange(c_ch) * (HW * HW)
    out_base = np.arange(o_ch) * (HW * HW)
    for h in range(HW):
        for ww in range(HW):
            for dh in range(KS):
                for dw in range(KS):
                    h1, w1 = h + dh - PAD, ww + dw - PAD
                    if 0 <= h1 < HW and 0 <= w1 < HW:
                        G[np.ix_(in_base + h1 * HW + w1,
                                 out_base + h * HW + ww)] = w[:, :, dh, dw].T
    return jnp.asarray(G)


def _broadcast_bias(b):
    # bias[o] replicated over the 25 spatial positions in NCHW-flatten order.
    return jnp.asarray(np.repeat(np.asarray(b, dtype=np.float32), HW * HW)[None, :])


def pack_params(p):
    # One-time repack: convs become dense "unrolled" matrices, fc weights stay
    # in (in, out) math layout.  No transposes/reshapes in the traced forward.
    return {
        "g1": _conv3x3_as_dense(p["conv1_w"]),       # (50, 400)
        "b1": _broadcast_bias(p["conv1_b"]),         # (1, 400)
        "g2": _conv3x3_as_dense(p["conv2_w"]),       # (400, 800)
        "b2": _broadcast_bias(p["conv2_b"]),         # (1, 800)
        "g3": p["fc1_w"],                            # (800, 256)
        "b3": p["fc1_b"].reshape(1, HIDDEN_DIM),     # (1, 256)
        "g4": p["fc2_w"],                            # (256, 26)
        "b4": p["fc2_b"].reshape(1, NUM_CLASSES),    # (1, 26)
    }


# ----------------------------------------------------------------------------
# Pure-JAX reference (PyTorch semantics) for correctness checking.
# ----------------------------------------------------------------------------
def reference_forward(params, x):
    dn = ("NCHW", "OIHW", "NCHW")
    y = jax.lax.conv_general_dilated(x, params["conv1_w"], (1, 1),
                                     ((1, 1), (1, 1)), dimension_numbers=dn)
    y = jax.nn.relu(y + params["conv1_b"][None, :, None, None])
    y = jax.lax.conv_general_dilated(y, params["conv2_w"], (1, 1),
                                     ((1, 1), (1, 1)), dimension_numbers=dn)
    y = jax.nn.relu(y + params["conv2_b"][None, :, None, None])
    flat = y.reshape(x.shape[0], -1)                 # NCHW flatten
    h = jax.nn.relu(flat @ params["fc1_w"] + params["fc1_b"])
    logits = h @ params["fc2_w"] + params["fc2_b"]
    return jax.nn.softmax(logits, axis=-1)


if __name__ == "__main__":
    key = jax.random.PRNGKey(0)
    pkey, xkey = jax.random.split(key)
    params = init_params(pkey)
    packed = pack_params(params)

    # Input implied by the module: Flatten sees 32*5*5 -> spatial 5x5, 2 channels.
    x = jax.random.normal(xkey, (2, CIN, HW, HW), jnp.float32)

    out = cnn_forward(packed, x)
    out = jax.block_until_ready(out)

    assert out.shape == (2, NUM_CLASSES)

    # softmax rows sum to 1 (exact divide in-kernel)
    row_sums = jnp.sum(out, axis=1)
    assert jnp.allclose(row_sums, jnp.ones_like(row_sums), atol=1e-3)

    # match the pure-JAX / PyTorch-semantics reference
    ref = reference_forward(params, x)
    max_diff = jnp.max(jnp.abs(out - ref))
    assert jnp.allclose(out, ref, atol=2e-3), f"max diff vs reference: {max_diff}"

    print("KERNEL_OK")
</pallas_src>

<mosaic_0001>
module attributes {stable_mosaic.version = 11 : i64} {
  func.func @_fused_cnn_kernel(%arg0: memref<2x50xf32, #tpu.memory_space<vmem>>, %arg1: memref<50x400xf32, #tpu.memory_space<vmem>>, %arg2: memref<1x400xf32, #tpu.memory_space<vmem>>, %arg3: memref<400x800xf32, #tpu.memory_space<vmem>>, %arg4: memref<1x800xf32, #tpu.memory_space<vmem>>, %arg5: memref<800x256xf32, #tpu.memory_space<vmem>>, %arg6: memref<1x256xf32, #tpu.memory_space<vmem>>, %arg7: memref<256x26xf32, #tpu.memory_space<vmem>>, %arg8: memref<1x26xf32, #tpu.memory_space<vmem>>, %arg9: memref<2x26xf32, #tpu.memory_space<vmem>>) attributes {dimension_semantics = [], scalar_prefetch = 0 : i64, scratch_operands = 0 : i64, tpu.core_type = #tpu.core_type<tc>} {
    %c0 = arith.constant 0 : index
    %c0_0 = arith.constant 0 : index
    %0 = vector.load %arg0[%c0, %c0_0] : memref<2x50xf32, #tpu.memory_space<vmem>>, vector<2x50xf32>
    %c0_1 = arith.constant 0 : index
    %c0_2 = arith.constant 0 : index
    %1 = vector.load %arg1[%c0_1, %c0_2] : memref<50x400xf32, #tpu.memory_space<vmem>>, vector<50x400xf32>
    %cst = arith.constant dense<0.000000e+00> : vector<2x400xf32>
    %2 = tpu.matmul %0, %1, %cst {dimension_numbers = #tpu.dot_dimension_numbers<[1], [0], [0], [1], [0, 0, 1, 1], [], []>} : vector<2x50xf32>, vector<50x400xf32>, vector<2x400xf32> -> vector<2x400xf32>
    %c0_3 = arith.constant 0 : index
    %c0_4 = arith.constant 0 : index
    %3 = vector.load %arg2[%c0_3, %c0_4] : memref<1x400xf32, #tpu.memory_space<vmem>>, vector<1x400xf32>
    %4 = vector.broadcast %3 : vector<1x400xf32> to vector<2x400xf32>
    %5 = arith.addf %2, %4 : vector<2x400xf32>
    %cst_5 = arith.constant 0.000000e+00 : f32
    %6 = vector.broadcast %cst_5 : f32 to vector<2x400xf32>
    %7 = arith.maximumf %5, %6 : vector<2x400xf32>
    %c0_6 = arith.constant 0 : index
    %c0_7 = arith.constant 0 : index
    %8 = vector.load %arg3[%c0_6, %c0_7] : memref<400x800xf32, #tpu.memory_space<vmem>>, vector<400x800xf32>
    %cst_8 = arith.constant dense<0.000000e+00> : vector<2x800xf32>
    %9 = tpu.matmul %7, %8, %cst_8 {dimension_numbers = #tpu.dot_dimension_numbers<[1], [0], [0], [1], [0, 0, 1, 1], [], []>} : vector<2x400xf32>, vector<400x800xf32>, vector<2x800xf32> -> vector<2x800xf32>
    %c0_9 = arith.constant 0 : index
    %c0_10 = arith.constant 0 : index
    %10 = vector.load %arg4[%c0_9, %c0_10] : memref<1x800xf32, #tpu.memory_space<vmem>>, vector<1x800xf32>
    %11 = vector.broadcast %10 : vector<1x800xf32> to vector<2x800xf32>
    %12 = arith.addf %9, %11 : vector<2x800xf32>
    %cst_11 = arith.constant 0.000000e+00 : f32
    %13 = vector.broadcast %cst_11 : f32 to vector<2x800xf32>
    %14 = arith.maximumf %12, %13 : vector<2x800xf32>
    %c0_12 = arith.constant 0 : index
    %c0_13 = arith.constant 0 : index
    %15 = vector.load %arg5[%c0_12, %c0_13] : memref<800x256xf32, #tpu.memory_space<vmem>>, vector<800x256xf32>
    %cst_14 = arith.constant dense<0.000000e+00> : vector<2x256xf32>
    %16 = tpu.matmul %14, %15, %cst_14 {dimension_numbers = #tpu.dot_dimension_numbers<[1], [0], [0], [1], [0, 0, 1, 1], [], []>} : vector<2x800xf32>, vector<800x256xf32>, vector<2x256xf32> -> vector<2x256xf32>
    %c0_15 = arith.constant 0 : index
    %c0_16 = arith.constant 0 : index
    %17 = vector.load %arg6[%c0_15, %c0_16] : memref<1x256xf32, #tpu.memory_space<vmem>>, vector<1x256xf32>
    %18 = vector.broadcast %17 : vector<1x256xf32> to vector<2x256xf32>
    %19 = arith.addf %16, %18 : vector<2x256xf32>
    %cst_17 = arith.constant 0.000000e+00 : f32
    %20 = vector.broadcast %cst_17 : f32 to vector<2x256xf32>
    %21 = arith.maximumf %19, %20 : vector<2x256xf32>
    %c0_18 = arith.constant 0 : index
    %c0_19 = arith.constant 0 : index
    %22 = vector.load %arg7[%c0_18, %c0_19] : memref<256x26xf32, #tpu.memory_space<vmem>>, vector<256x26xf32>
    %cst_20 = arith.constant dense<0.000000e+00> : vector<2x26xf32>
    %23 = tpu.matmul %21, %22, %cst_20 {dimension_numbers = #tpu.dot_dimension_numbers<[1], [0], [0], [1], [0, 0, 1, 1], [], []>} : vector<2x256xf32>, vector<256x26xf32>, vector<2x26xf32> -> vector<2x26xf32>
    %c0_21 = arith.constant 0 : index
    %c0_22 = arith.constant 0 : index
    %24 = vector.load %arg8[%c0_21, %c0_22] : memref<1x26xf32, #tpu.memory_space<vmem>>, vector<1x26xf32>
    %25 = vector.broadcast %24 : vector<1x26xf32> to vector<2x26xf32>
    %26 = arith.addf %23, %25 : vector<2x26xf32>
    %cst_23 = arith.constant dense<0xFF800000> : vector<2xf32>
    %27 = vector.multi_reduction <maximumf>, %26, %cst_23 [1] : vector<2x26xf32> to vector<2xf32>
    %28 = vector.shape_cast %27 : vector<2xf32> to vector<2x1xf32>
    %29 = vector.broadcast %28 : vector<2x1xf32> to vector<2x26xf32>
    %30 = arith.subf %26, %29 : vector<2x26xf32>
    %31 = math.exp %30 : vector<2x26xf32>
    %cst_24 = arith.constant dense<0.000000e+00> : vector<2xf32>
    %32 = vector.multi_reduction <add>, %31, %cst_24 [1] : vector<2x26xf32> to vector<2xf32>
    %33 = vector.shape_cast %32 : vector<2xf32> to vector<2x1xf32>
    %34 = vector.broadcast %33 : vector<2x1xf32> to vector<2x26xf32>
    %35 = arith.divf %31, %34 : vector<2x26xf32>
    %c0_25 = arith.constant 0 : index
    %c0_26 = arith.constant 0 : index
    %36 = vector.load %arg9[%c0_25, %c0_26] : memref<2x26xf32, #tpu.memory_space<vmem>>, vector<2x26xf32>
    tpu.vector_store %arg9[%c0_25, %c0_26], %35 {strides = array<i32>} : memref<2x26xf32, #tpu.memory_space<vmem>>, vector<2x26xf32>,
    return
  }
}

</mosaic_0001>

<llo_original>
// kernel: cnn_forward.1
$region0: #{cnn_forward.1}
  #allocation0 [shape = 'u32[]', space=smem, size = 0x4, offset = 0x4, fixed_abs, tag = 'smem constant byte address 0x4 - core index']
  #allocation1 [shape = 'u32[144,128]{1,0:T(1,128)}', space=vmem, size = 0x12000, scoped, tag = 'internal scratch']
  %s0 = inlined_call_operand.vmem [shape: f32[2,50], index: 0, kind: input, shape index: {}]
  %s1 = inlined_call_operand.hbm [shape: f32[50,400], index: 1, kind: input, shape index: {}]
  %s2 = inlined_call_operand.hbm [shape: f32[1,400], index: 2, kind: input, shape index: {}]
  %s3 = inlined_call_operand.hbm [shape: f32[400,800], index: 3, kind: input, shape index: {}]
  %s4 = inlined_call_operand.hbm [shape: f32[1,800], index: 4, kind: input, shape index: {}]
  %s5 = inlined_call_operand.hbm [shape: f32[800,256], index: 5, kind: input, shape index: {}]
  %s6 = inlined_call_operand.hbm [shape: f32[1,256], index: 6, kind: input, shape index: {}]
  %s7 = inlined_call_operand.vmem [shape: f32[256,26], index: 7, kind: input, shape index: {}]
  %s8 = inlined_call_operand.hbm [shape: f32[1,26], index: 8, kind: input, shape index: {}]
  %s9 = inlined_call_operand.hbm [shape: f32[2,26], index: 9, kind: output, shape index: {}]
  %s10 = sld [smem:[#allocation0]]
  $region74: #{cnn_forward.1} parent=0
    _
  %s12 = ssub.s32 1, %s10
  %s13 = scalar_select 0, %s12, %s10
  $region1: #{cnn_forward.1} parent=0
    #allocation2 [shape = 'u8[114688]{0}', space=vmem, size = 0x1c000, scoped, tag = 'input window, operand 1, single buffered']
    #allocation3 [shape = 's32[1]{0}', space=sflag, size = 0x4, scoped, tag = 'scoped memory for cnn_forward.1']
    #allocation4 [shape = 's32[1]{0}', space=sflag, size = 0x4, scoped, tag = 'scoped memory for cnn_forward.1']
    #allocation5 [shape = 'u8[2048]{0}', space=vmem, size = 0x800, scoped, tag = 'input window, operand 2, single buffered']
    #allocation6 [shape = 's32[1]{0}', space=sflag, size = 0x4, scoped, tag = 'scoped memory for cnn_forward.1']
    #allocation7 [shape = 'u8[1433600]{0}', space=vmem, size = 0x15e000, scoped, tag = 'input window, operand 3, single buffered']
    #allocation8 [shape = 'u8[3584]{0}', space=vmem, size = 0x1000, scoped, tag = 'input window, operand 4, single buffered']
    #allocation9 [shape = 's32[1]{0}', space=sflag, size = 0x4, scoped, tag = 'scoped memory for cnn_forward.1']
    #allocation10 [shape = 'u8[819200]{0}', space=vmem, size = 0xc8000, scoped, tag = 'input window, operand 5, single buffered']
    #allocation11 [shape = 'u8[1024]{0}', space=vmem, size = 0x400, scoped, tag = 'input window, operand 6, single buffered']
    #allocation12 [shape = 's32[1]{0}', space=sflag, size = 0x4, scoped, tag = 'scoped memory for cnn_forward.1']
    #allocation13 [shape = 'u8[512]{0}', space=vmem, size = 0x400, scoped, tag = 'input window, operand 8, single buffered']
    #allocation14 [shape = 'u8[1024]{0}', space=vmem, size = 0x400, scoped, tag = 'output window, operand 0, single buffered']
    %14 = vsyncpa [#allocation3], 0
    %15 = vsyncpa [#allocation6], 0
    %16 = vsyncpa [#allocation9], 0
    %17 = vsyncpa [#allocation12], 0
    %18 = vsyncpa [#allocation4], 0
    // Predicated region
    $region2: #{cnn_forward.1} parent=1 // pred_check
      _
    $region3: #{cnn_forward.1} parent=1 // pred_check_branch
      %20 = sbr.rel (0) target = $region5
    $region4: #{cnn_forward.1} parent=1 // pred_region
      _
    $region5: #{cnn_forward.1} parent=1 // pred_fallthru
      _
    // Predicated region
    $region6: #{cnn_forward.1} parent=1 // pred_check
      _
    $region7: #{cnn_forward.1} parent=1 // pred_check_branch
      %22 = sbr.rel (0) target = $region9
    $region8: #{cnn_forward.1} parent=1 // pred_region
      %s24 = ssub.s32 3584, 3584
      %25 = vsyncadd [#allocation3], %s24
      %s26 = sshll.u32 [#allocation2], 4
      %s27 = int_to_ptr.vmem [resolvable:$true] %s26
      %32 = dma.hbm_to_vmem [thread:$0]  %s1, 3584, %s27, [#allocation3], 512, 512, 32
    $region9: #{cnn_forward.1} parent=1 // pred_fallthru
      _
    // Predicated region
    $region10: #{cnn_forward.1} parent=1 // pred_check
      _
    $region11: #{cnn_forward.1} parent=1 // pred_check_branch
      %34 = sbr.rel (0) target = $region13
    $region12: #{cnn_forward.1} parent=1 // pred_region
      %s36 = ssub.s32 64, 64
      %37 = vsyncadd [#allocation6], %s36
      %s39 = sshll.u32 [#allocation5], 4
      %s40 = int_to_ptr.vmem [resolvable:$true] %s39
      %42 = dma.hbm_to_vmem [thread:$0]  %s2, 64, %s40, [#allocation6]
    $region13: #{cnn_forward.1} parent=1 // pred_fallthru
      _
    // Predicated region
    $region14: #{cnn_forward.1} parent=1 // pred_check
      _
    $region15: #{cnn_forward.1} parent=1 // pred_check_branch
      %44 = sbr.rel (0) target = $region17
    $region16: #{cnn_forward.1} parent=1 // pred_region
      %s46 = ssub.s32 44800, 44800
      %47 = vsyncadd [#allocation6], %s46
      %s48 = sshll.u32 [#allocation7], 4
      %s49 = int_to_ptr.vmem [resolvable:$true] %s48
      %54 = dma.hbm_to_vmem [thread:$0]  %s3, 44800, %s49, [#allocation6], 896, 896, 56
    $region17: #{cnn_forward.1} parent=1 // pred_fallthru
      _
    // Predicated region
    $region18: #{cnn_forward.1} parent=1 // pred_check
      _
    $region19: #{cnn_forward.1} parent=1 // pred_check_branch
      %56 = sbr.rel (0) target = $region21
    $region20: #{cnn_forward.1} parent=1 // pred_region
      %s58 = ssub.s32 112, 112
      %59 = vsyncadd [#allocation9], %s58
      %s61 = sshll.u32 [#allocation8], 4
      %s62 = int_to_ptr.vmem [resolvable:$true] %s61
      %64 = dma.hbm_to_vmem [thread:$0]  %s4, 112, %s62, [#allocation9]
    $region21: #{cnn_forward.1} parent=1 // pred_fallthru
      _
    // Predicated region
    $region22: #{cnn_forward.1} parent=1 // pred_check
      _
    $region23: #{cnn_forward.1} parent=1 // pred_check_branch
      %66 = sbr.rel (0) target = $region25
    $region24: #{cnn_forward.1} parent=1 // pred_region
      %s68 = ssub.s32 25600, 25600
      %69 = vsyncadd [#allocation9], %s68
      %s70 = sshll.u32 [#allocation10], 4
      %s71 = int_to_ptr.vmem [resolvable:$true] %s70
      %76 = dma.hbm_to_vmem [thread:$0]  %s5, 25600, %s71, [#allocation9], 256, 256, 16
    $region25: #{cnn_forward.1} parent=1 // pred_fallthru
      _
    // Predicated region
    $region26: #{cnn_forward.1} parent=1 // pred_check
      _
    $region27: #{cnn_forward.1} parent=1 // pred_check_branch
      %78 = sbr.rel (0) target = $region29
    $region28: #{cnn_forward.1} parent=1 // pred_region
      %s80 = ssub.s32 32, 32
      %81 = vsyncadd [#allocation12], %s80
      %s83 = sshll.u32 [#allocation11], 4
      %s84 = int_to_ptr.vmem [resolvable:$true] %s83
      %86 = dma.hbm_to_vmem [thread:$0]  %s6, 32, %s84, [#allocation12]
    $region29: #{cnn_forward.1} parent=1 // pred_fallthru
      _
    // Predicated region
    $region30: #{cnn_forward.1} parent=1 // pred_check
      _
    $region31: #{cnn_forward.1} parent=1 // pred_check_branch
      %88 = sbr.rel (0) target = $region33
    $region32: #{cnn_forward.1} parent=1 // pred_region
      _
    $region33: #{cnn_forward.1} parent=1 // pred_fallthru
      _
    // Predicated region
    $region34: #{cnn_forward.1} parent=1 // pred_check
      _
    $region35: #{cnn_forward.1} parent=1 // pred_check_branch
      %90 = sbr.rel (0) target = $region37
    $region36: #{cnn_forward.1} parent=1 // pred_region
      %s92 = ssub.s32 16, 16
      %93 = vsyncadd [#allocation12], %s92
      %s95 = sshll.u32 [#allocation13], 4
      %s96 = int_to_ptr.vmem [resolvable:$true] %s95
      %98 = dma.hbm_to_vmem [thread:$0]  %s8, 16, %s96, [#allocation12]
    $region37: #{cnn_forward.1} parent=1 // pred_fallthru
      _
    // Predicated region
    $region38: #{cnn_forward.1} parent=1 // pred_check
      _
    $region39: #{cnn_forward.1} parent=1 // pred_check_branch
      %100 = sbr.rel (0) target = $region41
    $region40: #{cnn_forward.1} parent=1 // pred_region
      %101 = dma.done [#allocation3], 3584
    $region41: #{cnn_forward.1} parent=1 // pred_fallthru
      _
    // Predicated region
    $region42: #{cnn_forward.1} parent=1 // pred_check
      _
    $region43: #{cnn_forward.1} parent=1 // pred_check_branch
      %103 = sbr.rel (0) target = $region45
    $region44: #{cnn_forward.1} parent=1 // pred_region
      %104 = dma.done [#allocation6], 64
    $region45: #{cnn_forward.1} parent=1 // pred_fallthru
      _
    // Predicated region
    $region46: #{cnn_forward.1} parent=1 // pred_check
      _
    $region47: #{cnn_forward.1} parent=1 // pred_check_branch
      %106 = sbr.rel (0) target = $region49
    $region48: #{cnn_forward.1} parent=1 // pred_region
      %107 = dma.done [#allocation6], 44800
    $region49: #{cnn_forward.1} parent=1 // pred_fallthru
      _
    // Predicated region
    $region50: #{cnn_forward.1} parent=1 // pred_check
      _
    $region51: #{cnn_forward.1} parent=1 // pred_check_branch
      %109 = sbr.rel (0) target = $region53
    $region52: #{cnn_forward.1} parent=1 // pred_region
      %110 = dma.done [#allocation9], 112
    $region53: #{cnn_forward.1} parent=1 // pred_fallthru
      _
    // Predicated region
    $region54: #{cnn_forward.1} parent=1 // pred_check
      _
    $region55: #{cnn_forward.1} parent=1 // pred_check_branch
      %112 = sbr.rel (0) target = $region57
    $region56: #{cnn_forward.1} parent=1 // pred_region
      %113 = dma.done [#allocation9], 25600
    $region57: #{cnn_forward.1} parent=1 // pred_fallthru
      _
    // Predicated region
    $region58: #{cnn_forward.1} parent=1 // pred_check
      _
    $region59: #{cnn_forward.1} parent=1 // pred_check_branch
      %115 = sbr.rel (0) target = $region61
    $region60: #{cnn_forward.1} parent=1 // pred_region
      %116 = dma.done [#allocation12], 32
    $region61: #{cnn_forward.1} parent=1 // pred_fallthru
      _
    // Predicated region
    $region62: #{cnn_forward.1} parent=1 // pred_check
      _
    $region63: #{cnn_forward.1} parent=1 // pred_check_branch
      %118 = sbr.rel (0) target = $region65
    $region64: #{cnn_forward.1} parent=1 // pred_region
      %119 = dma.done [#allocation12], 16
    $region65: #{cnn_forward.1} parent=1 // pred_fallthru
      _
    %v120 = vld [vmem:[%s0] sm:$0x3]
    %v121 = vld [vmem:[#allocation2] sm:$0xff]
    %v122 = vld [vmem:[#allocation2 + $0x8] sm:$0xff]
    %v123 = vld [vmem:[#allocation2 + $0x10] sm:$0xff]
    %v124 = vld [vmem:[#allocation2 + $0x18] sm:$0xff]
    %v125 = vld [vmem:[#allocation2 + $0x20] sm:$0xff]
    %v126 = vld [vmem:[#allocation2 + $0x28] sm:$0xff]
    %v127 = vld [vmem:[#allocation2 + $0x30] sm:$0xff]
    %v128 = vld [vmem:[#allocation2 + $0x38] sm:$0xff]
    %v129 = vld [vmem:[#allocation2 + $0x40] sm:$0xff]
    %v130 = vld [vmem:[#allocation2 + $0x48] sm:$0xff]
    %v131 = vld [vmem:[#allocation2 + $0x50] sm:$0xff]
    %v132 = vld [vmem:[#allocation2 + $0x58] sm:$0xff]
    %v133 = vld [vmem:[#allocation2 + $0x60] sm:$0xff]
    %v134 = vld [vmem:[#allocation2 + $0x68] sm:$0xff]
    %v135 = vld [vmem:[#allocation2 + $0x70] sm:$0xff]
    %v136 = vld [vmem:[#allocation2 + $0x78] sm:$0xff]
    %v137 = vld [vmem:[#allocation2 + $0x80] sm:$0xff]
    %v138 = vld [vmem:[#allocation2 + $0x88] sm:$0xff]
    %v139 = vld [vmem:[#allocation2 + $0x90] sm:$0xff]
    %v140 = vld [vmem:[#allocation2 + $0x98] sm:$0xff]
    %v141 = vld [vmem:[#allocation2 + $0xa0] sm:$0xff]
    %v142 = vld [vmem:[#allocation2 + $0xa8] sm:$0xff]
    %v143 = vld [vmem:[#allocation2 + $0xb0] sm:$0xff]
    %v144 = vld [vmem:[#allocation2 + $0xb8] sm:$0xff]
    %v145 = vld [vmem:[#allocation2 + $0xc0] sm:$0x3]
    %v146 = vld [vmem:[#allocation2 + $0xc8] sm:$0x3]
    %v147 = vld [vmem:[#allocation2 + $0xd0] sm:$0x3]
    %v148 = vld [vmem:[#allocation2 + $0xd8] sm:$0x3]
    %v149 = vld [vmem:[#allocation5] sm:$0xf]
    %v151 = vlaneseq
    %v152 = vshrl.u32 %v151, 7
    %v153 = vsub.s32 0, %v152
    %v154 = vrot.slane %v149, %v153
    %v155 = vlaneseq
    %v156 = vshrl.u32 %v155, 7
    %v157 = vsub.s32 1, %v156
    %v158 = vrot.slane %v149, %v157
    %v159 = vlaneseq
    %v160 = vshrl.u32 %v159, 7
    %v161 = vsub.s32 2, %v160
    %v162 = vrot.slane %v149, %v161
    %v163 = vlaneseq
    %v164 = vshrl.u32 %v163, 7
    %v165 = vsub.s32 3, %v164
    %v166 = vrot.slane %v149, %v165
    %vm171 = vcmask 408576
    %v173 = vsel %vm171, %v120, 0
    %vm175 = vcmask 1041408
    %v177 = vsel %vm175, %v145, 0
    %v180 = vsel %vm175, %v146, 0
    %v183 = vsel %vm175, %v147, 0
    %v186 = vsel %vm175, %v148, 0
    %188 = vmatprep.subr.mxu0 0.0
    %189 = vmatpush1.msra.mxu0 0.0
    %190 = vmatprep.subr.mxu0 0.0
    %191 = vmatpush1.msra.mxu0 0.0
    %192 = vmatprep.subr.mxu0 0.0
    %193 = vmatpush1.msra.mxu0 0.0
    %194 = vmatprep.subr.mxu0 0.0
    %195 = vmatpush1.msra.mxu0 0.0
    %196 = vmatprep.subr.mxu0 0.0
    %197 = vmatpush1.msra.mxu0 0.0
    %198 = vmatprep.subr.mxu0 0.0
    %199 = vmatpush1.msra.mxu0 0.0
    %200 = vmatprep.subr.mxu0 0.0
    %201 = vmatpush1.msra.mxu0 0.0
    %202 = vmatprep.subr.mxu0 0.0
    %203 = vmatpush1.msra.mxu0 0.0
    %204 = vmatprep.subr.mxu0 0.0
    %205 = vmatpush1.msra.mxu0 0.0
    %206 = vmatprep.subr.mxu0 %v180
    %207 = vmatpush1.msra.mxu0 %v177
    %208 = vmatprep.subr.mxu0 %v142
    %209 = vmatpush1.msra.mxu0 %v141
    %210 = vmatprep.subr.mxu0 %v138
    %211 = vmatpush1.msra.mxu0 %v137
    %212 = vmatprep.subr.mxu0 %v134
    %213 = vmatpush1.msra.mxu0 %v133
    %214 = vmatprep.subr.mxu0 %v130
    %215 = vmatpush1.msra.mxu0 %v129
    %216 = vmatprep.subr.mxu0 %v126
    %217 = vmatpush1.msra.mxu0 %v125
    %218 = vmatprep.subr.mxu0 %v122
    %219 = vmatpush1.msra.mxu0 %v121
    %220 = vmatprep.subr.mxu0 0.0
    %221 = vmatpush2.msra.mxu0 0.0
    %222 = vmatprep.subr.mxu0 0.0
    %223 = vmatpush2.msra.mxu0 0.0
    %224 = vmatprep.subr.mxu0 0.0
    %225 = vmatpush2.msra.mxu0 0.0
    %226 = vmatprep.subr.mxu0 0.0
    %227 = vmatpush2.msra.mxu0 0.0
    %228 = vmatprep.subr.mxu0 0.0
    %229 = vmatpush2.msra.mxu0 0.0
    %230 = vmatprep.subr.mxu0 0.0
    %231 = vmatpush2.msra.mxu0 0.0
    %232 = vmatprep.subr.mxu0 0.0
    %233 = vmatpush2.msra.mxu0 0.0
    %234 = vmatprep.subr.mxu0 0.0
    %235 = vmatpush2.msra.mxu0 0.0
    %236 = vmatprep.subr.mxu0 0.0
    %237 = vmatpush2.msra.mxu0 0.0
    %238 = vmatprep.subr.mxu0 0.0
    %239 = vmatpush2.msra.mxu0 0.0
    %240 = vmatprep.subr.mxu0 0.0
    %241 = vmatpush2.msra.mxu0 0.0
    %242 = vmatprep.subr.mxu0 0.0
    %243 = vmatpush2.msra.mxu0 0.0
    %244 = vmatprep.subr.mxu0 0.0
    %245 = vmatpush2.msra.mxu0 0.0
    %246 = vmatprep.subr.mxu0 0.0
    %247 = vmatpush2.msra.mxu0 0.0
    %248 = vmatprep.subr.mxu0 0.0
    %249 = vmatpush2.msra.mxu0 0.0
    %250 = vmatprep.subr.mxu0 0.0
    %251 = vmatpush2.msra.mxu0 0.0
    %252 = vmatprep.mubr.f32.mxu0 0.0
    %253 = vmatmul.mubr.f32.gmra.mxu0 %v173
    %v254 = vpop.f32.mrf.mxu0
    %v255 = vadd.f32 %v154, %v254
    %v256 = vpop.f32.mrf.mxu0
    %v257 = vadd.f32 %v158, %v256
    %258 = vdwg.mxu0
    %259 = vmatprep.subr.mxu0 0.0
    %260 = vmatpush1.msra.mxu0 0.0
    %261 = vmatprep.subr.mxu0 0.0
    %262 = vmatpush1.msra.mxu0 0.0
    %263 = vmatprep.subr.mxu0 0.0
    %264 = vmatpush1.msra.mxu0 0.0
    %265 = vmatprep.subr.mxu0 0.0
    %266 = vmatpush1.msra.mxu0 0.0
    %267 = vmatprep.subr.mxu0 0.0
    %268 = vmatpush1.msra.mxu0 0.0
    %269 = vmatprep.subr.mxu0 0.0
    %270 = vmatpush1.msra.mxu0 0.0
    %271 = vmatprep.subr.mxu0 0.0
    %272 = vmatpush1.msra.mxu0 0.0
    %273 = vmatprep.subr.mxu0 0.0
    %274 = vmatpush1.msra.mxu0 0.0
    %275 = vmatprep.subr.mxu0 0.0
    %276 = vmatpush1.msra.mxu0 0.0
    %277 = vmatprep.subr.mxu0 %v186
    %278 = vmatpush1.msra.mxu0 %v183
    %279 = vmatprep.subr.mxu0 %v144
    %280 = vmatpush1.msra.mxu0 %v143
    %281 = vmatprep.subr.mxu0 %v140
    %282 = vmatpush1.msra.mxu0 %v139
    %283 = vmatprep.subr.mxu0 %v136
    %284 = vmatpush1.msra.mxu0 %v135
    %285 = vmatprep.subr.mxu0 %v132
    %286 = vmatpush1.msra.mxu0 %v131
    %287 = vmatprep.subr.mxu0 %v128
    %288 = vmatpush1.msra.mxu0 %v127
    %289 = vmatprep.subr.mxu0 %v124
    %290 = vmatpush1.msra.mxu0 %v123
    %291 = vmatprep.subr.mxu0 0.0
    %292 = vmatpush2.msra.mxu0 0.0
    %293 = vmatprep.subr.mxu0 0.0
    %294 = vmatpush2.msra.mxu0 0.0
    %295 = vmatprep.subr.mxu0 0.0
    %296 = vmatpush2.msra.mxu0 0.0
    %297 = vmatprep.subr.mxu0 0.0
    %298 = vmatpush2.msra.mxu0 0.0
    %299 = vmatprep.subr.mxu0 0.0
    %300 = vmatpush2.msra.mxu0 0.0
    %301 = vmatprep.subr.mxu0 0.0
    %302 = vmatpush2.msra.mxu0 0.0
    %303 = vmatprep.subr.mxu0 0.0
    %304 = vmatpush2.msra.mxu0 0.0
    %305 = vmatprep.subr.mxu0 0.0
    %306 = vmatpush2.msra.mxu0 0.0
    %307 = vmatprep.subr.mxu0 0.0
    %308 = vmatpush2.msra.mxu0 0.0
    %309 = vmatprep.subr.mxu0 0.0
    %310 = vmatpush2.msra.mxu0 0.0
    %311 = vmatprep.subr.mxu0 0.0
    %312 = vmatpush2.msra.mxu0 0.0
    %313 = vmatprep.subr.mxu0 0.0
    %314 = vmatpush2.msra.mxu0 0.0
    %315 = vmatprep.subr.mxu0 0.0
    %316 = vmatpush2.msra.mxu0 0.0
    %317 = vmatprep.subr.mxu0 0.0
    %318 = vmatpush2.msra.mxu0 0.0
    %319 = vmatprep.subr.mxu0 0.0
    %320 = vmatpush2.msra.mxu0 0.0
    %321 = vmatprep.subr.mxu0 0.0
    %322 = vmatpush2.msra.mxu0 0.0
    %323 = vmatprep.mubr.f32.mxu0 0.0
    %324 = vmatmul.mubr.f32.gmra.mxu0 %v173
    %v325 = vpop.f32.mrf.mxu0
    %v326 = vadd.f32 %v162, %v325
    %v327 = vpop.f32.mrf.mxu0
    %v328 = vadd.f32 %v166, %v327
    %329 = vdwg.mxu0
    %v330 = vmax.f32 %v255, 0.0
    %v331 = vmax.f32 %v257, 0.0
    %v332 = vmax.f32 %v326, 0.0
    %v333 = vmax.f32 %v328, 0.0
    %v334 = vld [vmem:[#allocation7] sm:$0xff]
    %v335 = vld [vmem:[#allocation7 + $0x8] sm:$0xff]
    %v336 = vld [vmem:[#allocation7 + $0x10] sm:$0xff]
    %v337 = vld [vmem:[#allocation7 + $0x18] sm:$0xff]
    %v338 = vld [vmem:[#allocation7 + $0x20] sm:$0xff]
    %v339 = vld [vmem:[#allocation7 + $0x28] sm:$0xff]
    %v340 = vld [vmem:[#allocation7 + $0x30] sm:$0xff]
    %v341 = vld [vmem:[#allocation7 + $0x38] sm:$0xff]
    %v342 = vld [vmem:[#allocation7 + $0x40] sm:$0xff]
    %v343 = vld [vmem:[#allocation7 + $0x48] sm:$0xff]
    %v344 = vld [vmem:[#allocation7 + $0x50] sm:$0xff]
    %v345 = vld [vmem:[#allocation7 + $0x58] sm:$0xff]
    %v346 = vld [vmem:[#allocation7 + $0x60] sm:$0xff]
    %v347 = vld [vmem:[#allocation7 + $0x68] sm:$0xff]
    %v348 = vld [vmem:[#allocation7 + $0x70] sm:$0xff]
    %v349 = vld [vmem:[#allocation7 + $0x78] sm:$0xff]
    %v350 = vld [vmem:[#allocation7 + $0x80] sm:$0xff]
    %v351 = vld [vmem:[#allocation7 + $0x88] sm:$0xff]
    %v352 = vld [vmem:[#allocation7 + $0x90] sm:$0xff]
    %v353 = vld [vmem:[#allocation7 + $0x98] sm:$0xff]
    %v354 = vld [vmem:[#allocation7 + $0xa0] sm:$0xff]
    %v355 = vld [vmem:[#allocation7 + $0xa8] sm:$0xff]
    %v356 = vld [vmem:[#allocation7 + $0xb0] sm:$0xff]
    %v357 = vld [vmem:[#allocation7 + $0xb8] sm:$0xff]
    %v358 = vld [vmem:[#allocation7 + $0xc0] sm:$0xff]
    %v359 = vld [vmem:[#allocation7 + $0xc8] sm:$0xff]
    %v360 = vld [vmem:[#allocation7 + $0xd0] sm:$0xff]
    %v361 = vld [vmem:[#allocation7 + $0xd8] sm:$0xff]
    %v362 = vld [vmem:[#allocation7 + $0xe0] sm:$0xff]
    %v363 = vld [vmem:[#allocation7 + $0xe8] sm:$0xff]
    %v364 = vld [vmem:[#allocation7 + $0xf0] sm:$0xff]
    %v365 = vld [vmem:[#allocation7 + $0xf8] sm:$0xff]
    %v366 = vld [vmem:[#allocation7 + $0x100] sm:$0xff]
    %v367 = vld [vmem:[#allocation7 + $0x108] sm:$0xff]
    %v368 = vld [vmem:[#allocation7 + $0x110] sm:$0xff]
    %v369 = vld [vmem:[#allocation7 + $0x118] sm:$0xff]
    %v370 = vld [vmem:[#allocation7 + $0x120] sm:$0xff]
    %v371 = vld [vmem:[#allocation7 + $0x128] sm:$0xff]
    %v372 = vld [vmem:[#allocation7 + $0x130] sm:$0xff]
    %v373 = vld [vmem:[#allocation7 + $0x138] sm:$0xff]
    %v374 = vld [vmem:[#allocation7 + $0x140] sm:$0xff]
    %v375 = vld [vmem:[#allocation7 + $0x148] sm:$0xff]
    %v376 = vld [vmem:[#allocation7 + $0x150] sm:$0xff]
    %v377 = vld [vmem:[#allocation7 + $0x158] sm:$0xff]
    %v378 = vld [vmem:[#allocation7 + $0x160] sm:$0xff]
    %v379 = vld [vmem:[#allocation7 + $0x168] sm:$0xff]
    %v380 = vld [vmem:[#allocation7 + $0x170] sm:$0xff]
    %v381 = vld [vmem:[#allocation7 + $0x178] sm:$0xff]
    %v382 = vld [vmem:[#allocation7 + $0x180] sm:$0xff]
    %v383 = vld [vmem:[#allocation7 + $0x188] sm:$0xff]
    %v384 = vld [vmem:[#allocation7 + $0x190] sm:$0xff]
    %v385 = vld [vmem:[#allocation7 + $0x198] sm:$0xff]
    %v386 = vld [vmem:[#allocation7 + $0x1a0] sm:$0xff]
    %v387 = vld [vmem:[#allocation7 + $0x1a8] sm:$0xff]
    %v388 = vld [vmem:[#allocation7 + $0x1b0] sm:$0xff]
    %v389 = vld [vmem:[#allocation7 + $0x1b8] sm:$0xff]
    %v390 = vld [vmem:[#allocation7 + $0x1c0] sm:$0xff]
    %v391 = vld [vmem:[#allocation7 + $0x1c8] sm:$0xff]
    %v392 = vld [vmem:[#allocation7 + $0x1d0] sm:$0xff]
    %v393 = vld [vmem:[#allocation7 + $0x1d8] sm:$0xff]
    %v394 = vld [vmem:[#allocation7 + $0x1e0] sm:$0xff]
    %v395 = vld [vmem:[#allocation7 + $0x1e8] sm:$0xff]
    %v396 = vld [vmem:[#allocation7 + $0x1f0] sm:$0xff]
    %v397 = vld [vmem:[#allocation7 + $0x1f8] sm:$0xff]
    %v398 = vld [vmem:[#allocation7 + $0x200] sm:$0xff]
    %v399 = vld [vmem:[#allocation7 + $0x208] sm:$0xff]
    %v400 = vld [vmem:[#allocation7 + $0x210] sm:$0xff]
    %v401 = vld [vmem:[#allocation7 + $0x218] sm:$0xff]
    %v402 = vld [vmem:[#allocation7 + $0x220] sm:$0xff]
    %v403 = vld [vmem:[#allocation7 + $0x228] sm:$0xff]
    %v404 = vld [vmem:[#allocation7 + $0x230] sm:$0xff]
    %v405 = vld [vmem:[#allocation7 + $0x238] sm:$0xff]
    %v406 = vld [vmem:[#allocation7 + $0x240] sm:$0xff]
    %v407 = vld [vmem:[#allocation7 + $0x248] sm:$0xff]
    %v408 = vld [vmem:[#allocation7 + $0x250] sm:$0xff]
    %v409 = vld [vmem:[#allocation7 + $0x258] sm:$0xff]
    %v410 = vld [vmem:[#allocation7 + $0x260] sm:$0xff]
    %v411 = vld [vmem:[#allocation7 + $0x268] sm:$0xff]
    %v412 = vld [vmem:[#allocation7 + $0x270] sm:$0xff]
    %v413 = vld [vmem:[#allocation7 + $0x278] sm:$0xff]
    %v414 = vld [vmem:[#allocation7 + $0x280] sm:$0xff]
    %v415 = vld [vmem:[#allocation7 + $0x288] sm:$0xff]
    %v416 = vld [vmem:[#allocation7 + $0x290] sm:$0xff]
    %v417 = vld [vmem:[#allocation7 + $0x298] sm:$0xff]
    %v418 = vld [vmem:[#allocation7 + $0x2a0] sm:$0xff]
    %v419 = vld [vmem:[#allocation7 + $0x2a8] sm:$0xff]
    %v420 = vld [vmem:[#allocation7 + $0x2b0] sm:$0xff]
    %v421 = vld [vmem:[#allocation7 + $0x2b8] sm:$0xff]
    %v422 = vld [vmem:[#allocation7 + $0x2c0] sm:$0xff]
    %v423 = vld [vmem:[#allocation7 + $0x2c8] sm:$0xff]
    %v424 = vld [vmem:[#allocation7 + $0x2d0] sm:$0xff]
    %v425 = vld [vmem:[#allocation7 + $0x2d8] sm:$0xff]
    %v426 = vld [vmem:[#allocation7 + $0x2e0] sm:$0xff]
    %v427 = vld [vmem:[#allocation7 + $0x2e8] sm:$0xff]
    %v428 = vld [vmem:[#allocation7 + $0x2f0] sm:$0xff]
    %v429 = vld [vmem:[#allocation7 + $0x2f8] sm:$0xff]
    %v430 = vld [vmem:[#allocation7 + $0x300] sm:$0xff]
    %v431 = vld [vmem:[#allocation7 + $0x308] sm:$0xff]
    %v432 = vld [vmem:[#allocation7 + $0x310] sm:$0xff]
    %v433 = vld [vmem:[#allocation7 + $0x318] sm:$0xff]
    %v434 = vld [vmem:[#allocation7 + $0x320] sm:$0xff]
    %v435 = vld [vmem:[#allocation7 + $0x328] sm:$0xff]
    %v436 = vld [vmem:[#allocation7 + $0x330] sm:$0xff]
    %v437 = vld [vmem:[#allocation7 + $0x338] sm:$0xff]
    %v438 = vld [vmem:[#allocation7 + $0x340] sm:$0xff]
    %v439 = vld [vmem:[#allocation7 + $0x348] sm:$0xff]
    %v440 = vld [vmem:[#allocation7 + $0x350] sm:$0xff]
    %v441 = vld [vmem:[#allocation7 + $0x358] sm:$0xff]
    %v442 = vld [vmem:[#allocation7 + $0x360] sm:$0xff]
    %v443 = vld [vmem:[#allocation7 + $0x368] sm:$0xff]
    %v444 = vld [vmem:[#allocation7 + $0x370] sm:$0xff]
    %v445 = vld [vmem:[#allocation7 + $0x378] sm:$0xff]
    %v446 = vld [vmem:[#allocation7 + $0x380] sm:$0xff]
    %v447 = vld [vmem:[#allocation7 + $0x388] sm:$0xff]
    %v448 = vld [vmem:[#allocation7 + $0x390] sm:$0xff]
    %v449 = vld [vmem:[#allocation7 + $0x398] sm:$0xff]
    %v450 = vld [vmem:[#allocation7 + $0x3a0] sm:$0xff]
    %v451 = vld [vmem:[#allocation7 + $0x3a8] sm:$0xff]
    %v452 = vld [vmem:[#allocation7 + $0x3b0] sm:$0xff]
    %v453 = vld [vmem:[#allocation7 + $0x3b8] sm:$0xff]
    %v454 = vld [vmem:[#allocation7 + $0x3c0] sm:$0xff]
    %v455 = vld [vmem:[#allocation7 + $0x3c8] sm:$0xff]
    %v456 = vld [vmem:[#allocation7 + $0x3d0] sm:$0xff]
    %v457 = vld [vmem:[#allocation7 + $0x3d8] sm:$0xff]
    %v458 = vld [vmem:[#allocation7 + $0x3e0] sm:$0xff]
    %v459 = vld [vmem:[#allocation7 + $0x3e8] sm:$0xff]
    %v460 = vld [vmem:[#allocation7 + $0x3f0] sm:$0xff]
    %v461 = vld [vmem:[#allocation7 + $0x3f8] sm:$0xff]
    %v462 = vld [vmem:[#allocation7 + $0x400] sm:$0xff]
    %v463 = vld [vmem:[#allocation7 + $0x408] sm:$0xff]
    %v464 = vld [vmem:[#allocation7 + $0x410] sm:$0xff]
    %v465 = vld [vmem:[#allocation7 + $0x418] sm:$0xff]
    %v466 = vld [vmem:[#allocation7 + $0x420] sm:$0xff]
    %v467 = vld [vmem:[#allocation7 + $0x428] sm:$0xff]
    %v468 = vld [vmem:[#allocation7 + $0x430] sm:$0xff]
    %v469 = vld [vmem:[#allocation7 + $0x438] sm:$0xff]
    %v470 = vld [vmem:[#allocation7 + $0x440] sm:$0xff]
    %v471 = vld [vmem:[#allocation7 + $0x448] sm:$0xff]
    %v472 = vld [vmem:[#allocation7 + $0x450] sm:$0xff]
    %v473 = vld [vmem:[#allocation7 + $0x458] sm:$0xff]
    %v474 = vld [vmem:[#allocation7 + $0x460] sm:$0xff]
    %v475 = vld [vmem:[#allocation7 + $0x468] sm:$0xff]
    %v476 = vld [vmem:[#allocation7 + $0x470] sm:$0xff]
    %v477 = vld [vmem:[#allocation7 + $0x478] sm:$0xff]
    %v478 = vld [vmem:[#allocation7 + $0x480] sm:$0xff]
    %v479 = vld [vmem:[#allocation7 + $0x488] sm:$0xff]
    %v480 = vld [vmem:[#allocation7 + $0x490] sm:$0xff]
    %v481 = vld [vmem:[#allocation7 + $0x498] sm:$0xff]
    %v482 = vld [vmem:[#allocation7 + $0x4a0] sm:$0xff]
    %v483 = vld [vmem:[#allocation7 + $0x4a8] sm:$0xff]
    %v484 = vld [vmem:[#allocation7 + $0x4b0] sm:$0xff]
    %v485 = vld [vmem:[#allocation7 + $0x4b8] sm:$0xff]
    %v486 = vld [vmem:[#allocation7 + $0x4c0] sm:$0xff]
    %v487 = vld [vmem:[#allocation7 + $0x4c8] sm:$0xff]
    %v488 = vld [vmem:[#allocation7 + $0x4d0] sm:$0xff]
    %v489 = vld [vmem:[#allocation7 + $0x4d8] sm:$0xff]
    %v490 = vld [vmem:[#allocation7 + $0x4e0] sm:$0xff]
    %v491 = vld [vmem:[#allocation7 + $0x4e8] sm:$0xff]
    %v492 = vld [vmem:[#allocation7 + $0x4f0] sm:$0xff]
    %v493 = vld [vmem:[#allocation7 + $0x4f8] sm:$0xff]
    %v494 = vld [vmem:[#allocation7 + $0x500] sm:$0xff]
    %v495 = vld [vmem:[#allocation7 + $0x508] sm:$0xff]
    %v496 = vld [vmem:[#allocation7 + $0x510] sm:$0xff]
    %v497 = vld [vmem:[#allocation7 + $0x518] sm:$0xff]
    %v498 = vld [vmem:[#allocation7 + $0x520] sm:$0xff]
    %v499 = vld [vmem:[#allocation7 + $0x528] sm:$0xff]
    %v500 = vld [vmem:[#allocation7 + $0x530] sm:$0xff]
    %v501 = vld [vmem:[#allocation7 + $0x538] sm:$0xff]
    %v502 = vld [vmem:[#allocation7 + $0x540] sm:$0xff]
    %v503 = vld [vmem:[#allocation7 + $0x548] sm:$0xff]
    %v504 = vld [vmem:[#allocation7 + $0x550] sm:$0xff]
    %v505 = vld [vmem:[#allocation7 + $0x558] sm:$0xff]
    %v506 = vld [vmem:[#allocation7 + $0x560] sm:$0xff]
    %v507 = vld [vmem:[#allocation7 + $0x568] sm:$0xff]
    %v508 = vld [vmem:[#allocation7 + $0x570] sm:$0xff]
    %v509 = vld [vmem:[#allocation7 + $0x578] sm:$0xff]
    %v510 = vld [vmem:[#allocation7 + $0x580] sm:$0xff]
    %v511 = vld [vmem:[#allocation7 + $0x588] sm:$0xff]
    %v512 = vld [vmem:[#allocation7 + $0x590] sm:$0xff]
    %v513 = vld [vmem:[#allocation7 + $0x598] sm:$0xff]
    %v514 = vld [vmem:[#allocation7 + $0x5a0] sm:$0xff]
    %v515 = vld [vmem:[#allocation7 + $0x5a8] sm:$0xff]
    %v516 = vld [vmem:[#allocation7 + $0x5b0] sm:$0xff]
    %v517 = vld [vmem:[#allocation7 + $0x5b8] sm:$0xff]
    %v518 = vld [vmem:[#allocation7 + $0x5c0] sm:$0xff]
    %v519 = vld [vmem:[#allocation7 + $0x5c8] sm:$0xff]
    %v520 = vld [vmem:[#allocation7 + $0x5d0] sm:$0xff]
    %v521 = vld [vmem:[#allocation7 + $0x5d8] sm:$0xff]
    %v522 = vld [vmem:[#allocation7 + $0x5e0] sm:$0xff]
    %v523 = vld [vmem:[#allocation7 + $0x5e8] sm:$0xff]
    %v524 = vld [vmem:[#allocation7 + $0x5f0] sm:$0xff]
    %v525 = vld [vmem:[#allocation7 + $0x5f8] sm:$0xff]
    %v526 = vld [vmem:[#allocation7 + $0x600] sm:$0xff]
    %v527 = vld [vmem:[#allocation7 + $0x608] sm:$0xff]
    %v528 = vld [vmem:[#allocation7 + $0x610] sm:$0xff]
    %v529 = vld [vmem:[#allocation7 + $0x618] sm:$0xff]
    %v530 = vld [vmem:[#allocation7 + $0x620] sm:$0xff]
    %v531 = vld [vmem:[#allocation7 + $0x628] sm:$0xff]
    %v532 = vld [vmem:[#allocation7 + $0x630] sm:$0xff]
    %v533 = vld [vmem:[#allocation7 + $0x638] sm:$0xff]
    %v534 = vld [vmem:[#allocation7 + $0x640] sm:$0xff]
    %v535 = vld [vmem:[#allocation7 + $0x648] sm:$0xff]
    %v536 = vld [vmem:[#allocation7 + $0x650] sm:$0xff]
    %v537 = vld [vmem:[#allocation7 + $0x658] sm:$0xff]
    %v538 = vld [vmem:[#allocation7 + $0x660] sm:$0xff]
    %v539 = vld [vmem:[#allocation7 + $0x668] sm:$0xff]
    %v540 = vld [vmem:[#allocation7 + $0x670] sm:$0xff]
    %v541 = vld [vmem:[#allocation7 + $0x678] sm:$0xff]
    %v542 = vld [vmem:[#allocation7 + $0x680] sm:$0xff]
    %v543 = vld [vmem:[#allocation7 + $0x688] sm:$0xff]
    %v544 = vld [vmem:[#allocation7 + $0x690] sm:$0xff]
    %v545 = vld [vmem:[#allocation7 + $0x698] sm:$0xff]
    %v546 = vld [vmem:[#allocation7 + $0x6a0] sm:$0xff]
    %v547 = vld [vmem:[#allocation7 + $0x6a8] sm:$0xff]
    %v548 = vld [vmem:[#allocation7 + $0x6b0] sm:$0xff]
    %v549 = vld [vmem:[#allocation7 + $0x6b8] sm:$0xff]
    %v550 = vld [vmem:[#allocation7 + $0x6c0] sm:$0xff]
    %v551 = vld [vmem:[#allocation7 + $0x6c8] sm:$0xff]
    %v552 = vld [vmem:[#allocation7 + $0x6d0] sm:$0xff]
    %v553 = vld [vmem:[#allocation7 + $0x6d8] sm:$0xff]
    %v554 = vld [vmem:[#allocation7 + $0x6e0] sm:$0xff]
    %v555 = vld [vmem:[#allocation7 + $0x6e8] sm:$0xff]
    %v556 = vld [vmem:[#allocation7 + $0x6f0] sm:$0xff]
    %v557 = vld [vmem:[#allocation7 + $0x6f8] sm:$0xff]
    %v558 = vld [vmem:[#allocation7 + $0x700] sm:$0xff]
    %v559 = vld [vmem:[#allocation7 + $0x708] sm:$0xff]
    %v560 = vld [vmem:[#allocation7 + $0x710] sm:$0xff]
    %v561 = vld [vmem:[#allocation7 + $0x718] sm:$0xff]
    %v562 = vld [vmem:[#allocation7 + $0x720] sm:$0xff]
    %v563 = vld [vmem:[#allocation7 + $0x728] sm:$0xff]
    %v564 = vld [vmem:[#allocation7 + $0x730] sm:$0xff]
    %v565 = vld [vmem:[#allocation7 + $0x738] sm:$0xff]
    %v566 = vld [vmem:[#allocation7 + $0x740] sm:$0xff]
    %v567 = vld [vmem:[#allocation7 + $0x748] sm:$0xff]
    %v568 = vld [vmem:[#allocation7 + $0x750] sm:$0xff]
    %v569 = vld [vmem:[#allocation7 + $0x758] sm:$0xff]
    %v570 = vld [vmem:[#allocation7 + $0x760] sm:$0xff]
    %v571 = vld [vmem:[#allocation7 + $0x768] sm:$0xff]
    %v572 = vld [vmem:[#allocation7 + $0x770] sm:$0xff]
    %v573 = vld [vmem:[#allocation7 + $0x778] sm:$0xff]
    %v574 = vld [vmem:[#allocation7 + $0x780] sm:$0xff]
    %v575 = vld [vmem:[#allocation7 + $0x788] sm:$0xff]
    %v576 = vld [vmem:[#allocation7 + $0x790] sm:$0xff]
    %v577 = vld [vmem:[#allocation7 + $0x798] sm:$0xff]
    %v578 = vld [vmem:[#allocation7 + $0x7a0] sm:$0xff]
    %v579 = vld [vmem:[#allocation7 + $0x7a8] sm:$0xff]
    %v580 = vld [vmem:[#allocation7 + $0x7b0] sm:$0xff]
    %v581 = vld [vmem:[#allocation7 + $0x7b8] sm:$0xff]
    %v582 = vld [vmem:[#allocation7 + $0x7c0] sm:$0xff]
    %v583 = vld [vmem:[#allocation7 + $0x7c8] sm:$0xff]
    %v584 = vld [vmem:[#allocation7 + $0x7d0] sm:$0xff]
    %v585 = vld [vmem:[#allocation7 + $0x7d8] sm:$0xff]
    %v586 = vld [vmem:[#allocation7 + $0x7e0] sm:$0xff]
    %v587 = vld [vmem:[#allocation7 + $0x7e8] sm:$0xff]
    %v588 = vld [vmem:[#allocation7 + $0x7f0] sm:$0xff]
    %v589 = vld [vmem:[#allocation7 + $0x7f8] sm:$0xff]
    %v590 = vld [vmem:[#allocation7 + $0x800] sm:$0xff]
    %v591 = vld [vmem:[#allocation7 + $0x808] sm:$0xff]
    %v592 = vld [vmem:[#allocation7 + $0x810] sm:$0xff]
    %v593 = vld [vmem:[#allocation7 + $0x818] sm:$0xff]
    %v594 = vld [vmem:[#allocation7 + $0x820] sm:$0xff]
    %v595 = vld [vmem:[#allocation7 + $0x828] sm:$0xff]
    %v596 = vld [vmem:[#allocation7 + $0x830] sm:$0xff]
    %v597 = vld [vmem:[#allocation7 + $0x838] sm:$0xff]
    %v598 = vld [vmem:[#allocation7 + $0x840] sm:$0xff]
    %v599 = vld [vmem:[#allocation7 + $0x848] sm:$0xff]
    %v600 = vld [vmem:[#allocation7 + $0x850] sm:$0xff]
    %v601 = vld [vmem:[#allocation7 + $0x858] sm:$0xff]
    %v602 = vld [vmem:[#allocation7 + $0x860] sm:$0xff]
    %v603 = vld [vmem:[#allocation7 + $0x868] sm:$0xff]
    %v604 = vld [vmem:[#allocation7 + $0x870] sm:$0xff]
    %v605 = vld [vmem:[#allocation7 + $0x878] sm:$0xff]
    %v606 = vld [vmem:[#allocation7 + $0x880] sm:$0xff]
    %v607 = vld [vmem:[#allocation7 + $0x888] sm:$0xff]
    %v608 = vld [vmem:[#allocation7 + $0x890] sm:$0xff]
    %v609 = vld [vmem:[#allocation7 + $0x898] sm:$0xff]
    %v610 = vld [vmem:[#allocation7 + $0x8a0] sm:$0xff]
    %v611 = vld [vmem:[#allocation7 + $0x8a8] sm:$0xff]
    %v612 = vld [vmem:[#allocation7 + $0x8b0] sm:$0xff]
    %v613 = vld [vmem:[#allocation7 + $0x8b8] sm:$0xff]
    %v614 = vld [vmem:[#allocation7 + $0x8c0] sm:$0xff]
    %v615 = vld [vmem:[#allocation7 + $0x8c8] sm:$0xff]
    %v616 = vld [vmem:[#allocation7 + $0x8d0] sm:$0xff]
    %v617 = vld [vmem:[#allocation7 + $0x8d8] sm:$0xff]
    %v618 = vld [vmem:[#allocation7 + $0x8e0] sm:$0xff]
    %v619 = vld [vmem:[#allocation7 + $0x8e8] sm:$0xff]
    %v620 = vld [vmem:[#allocation7 + $0x8f0] sm:$0xff]
    %v621 = vld [vmem:[#allocation7 + $0x8f8] sm:$0xff]
    %v622 = vld [vmem:[#allocation7 + $0x900] sm:$0xff]
    %v623 = vld [vmem:[#allocation7 + $0x908] sm:$0xff]
    %v624 = vld [vmem:[#allocation7 + $0x910] sm:$0xff]
    %v625 = vld [vmem:[#allocation7 + $0x918] sm:$0xff]
    %v626 = vld [vmem:[#allocation7 + $0x920] sm:$0xff]
    %v627 = vld [vmem:[#allocation7 + $0x928] sm:$0xff]
    %v628 = vld [vmem:[#allocation7 + $0x930] sm:$0xff]
    %v629 = vld [vmem:[#allocation7 + $0x938] sm:$0xff]
    %v630 = vld [vmem:[#allocation7 + $0x940] sm:$0xff]
    %v631 = vld [vmem:[#allocation7 + $0x948] sm:$0xff]
    %v632 = vld [vmem:[#allocation7 + $0x950] sm:$0xff]
    %v633 = vld [vmem:[#allocation7 + $0x958] sm:$0xff]
    %v634 = vld [vmem:[#allocation7 + $0x960] sm:$0xff]
    %v635 = vld [vmem:[#allocation7 + $0x968] sm:$0xff]
    %v636 = vld [vmem:[#allocation7 + $0x970] sm:$0xff]
    %v637 = vld [vmem:[#allocation7 + $0x978] sm:$0xff]
    %v638 = vld [vmem:[#allocation7 + $0x980] sm:$0xff]
    %v639 = vld [vmem:[#allocation7 + $0x988] sm:$0xff]
    %v640 = vld [vmem:[#allocation7 + $0x990] sm:$0xff]
    %v641 = vld [vmem:[#allocation7 + $0x998] sm:$0xff]
    %v642 = vld [vmem:[#allocation7 + $0x9a0] sm:$0xff]
    %v643 = vld [vmem:[#allocation7 + $0x9a8] sm:$0xff]
    %v644 = vld [vmem:[#allocation7 + $0x9b0] sm:$0xff]
    %v645 = vld [vmem:[#allocation7 + $0x9b8] sm:$0xff]
    %v646 = vld [vmem:[#allocation7 + $0x9c0] sm:$0xff]
    %v647 = vld [vmem:[#allocation7 + $0x9c8] sm:$0xff]
    %v648 = vld [vmem:[#allocation7 + $0x9d0] sm:$0xff]
    %v649 = vld [vmem:[#allocation7 + $0x9d8] sm:$0xff]
    %v650 = vld [vmem:[#allocation7 + $0x9e0] sm:$0xff]
    %v651 = vld [vmem:[#allocation7 + $0x9e8] sm:$0xff]
    %v652 = vld [vmem:[#allocation7 + $0x9f0] sm:$0xff]
    %v653 = vld [vmem:[#allocation7 + $0x9f8] sm:$0xff]
    %v654 = vld [vmem:[#allocation7 + $0xa00] sm:$0xff]
    %v655 = vld [vmem:[#allocation7 + $0xa08] sm:$0xff]
    %v656 = vld [vmem:[#allocation7 + $0xa10] sm:$0xff]
    %v657 = vld [vmem:[#allocation7 + $0xa18] sm:$0xff]
    %v658 = vld [vmem:[#allocation7 + $0xa20] sm:$0xff]
    %v659 = vld [vmem:[#allocation7 + $0xa28] sm:$0xff]
    %v660 = vld [vmem:[#allocation7 + $0xa30] sm:$0xff]
    %v661 = vld [vmem:[#allocation7 + $0xa38] sm:$0xff]
    %v662 = vld [vmem:[#allocation7 + $0xa40] sm:$0xff]
    %v663 = vld [vmem:[#allocation7 + $0xa48] sm:$0xff]
    %v664 = vld [vmem:[#allocation7 + $0xa50] sm:$0xff]
    %v665 = vld [vmem:[#allocation7 + $0xa58] sm:$0xff]
    %v666 = vld [vmem:[#allocation7 + $0xa60] sm:$0xff]
    %v667 = vld [vmem:[#allocation7 + $0xa68] sm:$0xff]
    %v668 = vld [vmem:[#allocation7 + $0xa70] sm:$0xff]
    %v669 = vld [vmem:[#allocation7 + $0xa78] sm:$0xff]
    %v670 = vld [vmem:[#allocation7 + $0xa80] sm:$0xff]
    %v671 = vld [vmem:[#allocation7 + $0xa88] sm:$0xff]
    %v672 = vld [vmem:[#allocation7 + $0xa90] sm:$0xff]
    %v673 = vld [vmem:[#allocation7 + $0xa98] sm:$0xff]
    %v674 = vld [vmem:[#allocation7 + $0xaa0] sm:$0xff]
    %v675 = vld [vmem:[#allocation7 + $0xaa8] sm:$0xff]
    %v676 = vld [vmem:[#allocation7 + $0xab0] sm:$0xff]
    %v677 = vld [vmem:[#allocation7 + $0xab8] sm:$0xff]
    %v678 = vld [vmem:[#allocation7 + $0xac0] sm:$0xff]
    %v679 = vld [vmem:[#allocation7 + $0xac8] sm:$0xff]
    %v680 = vld [vmem:[#allocation7 + $0xad0] sm:$0xff]
    %v681 = vld [vmem:[#allocation7 + $0xad8] sm:$0xff]
    %v682 = vld [vmem:[#allocation7 + $0xae0] sm:$0xff]
    %v683 = vld [vmem:[#allocation7 + $0xae8] sm:$0xff]
    %v684 = vld [vmem:[#allocation8] sm:$0x7f]
    %v686 = vlaneseq
    %v687 = vshrl.u32 %v686, 7
    %v688 = vsub.s32 0, %v687
    %v689 = vrot.slane %v684, %v688
    %v690 = vlaneseq
    %v691 = vshrl.u32 %v690, 7
    %v692 = vsub.s32 1, %v691
    %v693 = vrot.slane %v684, %v692
    %v694 = vlaneseq
    %v695 = vshrl.u32 %v694, 7
    %v696 = vsub.s32 2, %v695
    %v697 = vrot.slane %v684, %v696
    %v698 = vlaneseq
    %v699 = vshrl.u32 %v698, 7
    %v700 = vsub.s32 3, %v699
    %v701 = vrot.slane %v684, %v700
    %v702 = vlaneseq
    %v703 = vshrl.u32 %v702, 7
    %v704 = vsub.s32 4, %v703
    %v705 = vrot.slane %v684, %v704
    %v706 = vlaneseq
    %v707 = vshrl.u32 %v706, 7
    %v708 = vsub.s32 5, %v707
    %v709 = vrot.slane %v684, %v708
    %v710 = vlaneseq
    %v711 = vshrl.u32 %v710, 7
    %v712 = vsub.s32 6, %v711
    %v713 = vrot.slane %v684, %v712
    %vm721 = vcmask 130048
    %v723 = vsel %vm721, %v333, 0
    %725 = vmatprep.subr.mxu0 %v440
    %726 = vmatpush1.msra.mxu0 %v439
    %727 = vmatprep.subr.mxu0 %v433
    %728 = vmatpush1.msra.mxu0 %v432
    %729 = vmatprep.subr.mxu0 %v426
    %730 = vmatpush1.msra.mxu0 %v425
    %731 = vmatprep.subr.mxu0 %v419
    %732 = vmatpush1.msra.mxu0 %v418
    %733 = vmatprep.subr.mxu0 %v412
    %734 = vmatpush1.msra.mxu0 %v411
    %735 = vmatprep.subr.mxu0 %v405
    %736 = vmatpush1.msra.mxu0 %v404
    %737 = vmatprep.subr.mxu0 %v398
    %738 = vmatpush1.msra.mxu0 %v397
    %739 = vmatprep.subr.mxu0 %v391
    %740 = vmatpush1.msra.mxu0 %v390
    %741 = vmatprep.subr.mxu0 %v384
    %742 = vmatpush1.msra.mxu0 %v383
    %743 = vmatprep.subr.mxu0 %v377
    %744 = vmatpush1.msra.mxu0 %v376
    %745 = vmatprep.subr.mxu0 %v370
    %746 = vmatpush1.msra.mxu0 %v369
    %747 = vmatprep.subr.mxu0 %v363
    %748 = vmatpush1.msra.mxu0 %v362
    %749 = vmatprep.subr.mxu0 %v356
    %750 = vmatpush1.msra.mxu0 %v355
    %751 = vmatprep.subr.mxu0 %v349
    %752 = vmatpush1.msra.mxu0 %v348
    %753 = vmatprep.subr.mxu0 %v342
    %754 = vmatpush1.msra.mxu0 %v341
    %755 = vmatprep.subr.mxu0 %v335
    %756 = vmatpush1.msra.mxu0 %v334
    %757 = vmatprep.subr.mxu0 %v552
    %758 = vmatpush2.msra.mxu0 %v551
    %759 = vmatprep.subr.mxu0 %v545
    %760 = vmatpush2.msra.mxu0 %v544
    %761 = vmatprep.subr.mxu0 %v538
    %762 = vmatpush2.msra.mxu0 %v537
    %763 = vmatprep.subr.mxu0 %v531
    %764 = vmatpush2.msra.mxu0 %v530
    %765 = vmatprep.subr.mxu0 %v524
    %766 = vmatpush2.msra.mxu0 %v523
    %767 = vmatprep.subr.mxu0 %v517
    %768 = vmatpush2.msra.mxu0 %v516
    %769 = vmatprep.subr.mxu0 %v510
    %770 = vmatpush2.msra.mxu0 %v509
    %771 = vmatprep.subr.mxu0 %v503
    %772 = vmatpush2.msra.mxu0 %v502
    %773 = vmatprep.subr.mxu0 %v496
    %774 = vmatpush2.msra.mxu0 %v495
    %775 = vmatprep.subr.mxu0 %v489
    %776 = vmatpush2.msra.mxu0 %v488
    %777 = vmatprep.subr.mxu0 %v482
    %778 = vmatpush2.msra.mxu0 %v481
    %779 = vmatprep.subr.mxu0 %v475
    %780 = vmatpush2.msra.mxu0 %v474
    %781 = vmatprep.subr.mxu0 %v468
    %782 = vmatpush2.msra.mxu0 %v467
    %783 = vmatprep.subr.mxu0 %v461
    %784 = vmatpush2.msra.mxu0 %v460
    %785 = vmatprep.subr.mxu0 %v454
    %786 = vmatpush2.msra.mxu0 %v453
    %787 = vmatprep.subr.mxu0 %v447
    %788 = vmatpush2.msra.mxu0 %v446
    %789 = vmatprep.mubr.f32.mxu0 %v331
    %790 = vmatmul.mubr.f32.gmra.mxu0 %v330
    %v791 = vpop.f32.mrf.mxu0
    %v792 = vadd.f32 %v689, %v791
    %v793 = vpop.f32.mrf.mxu0
    %v794 = vadd.f32 %v693, %v793
    %795 = vdwg.mxu0
    %796 = vmatprep.subr.mxu0 %v664
    %797 = vmatpush1.msra.mxu0 %v663
    %798 = vmatprep.subr.mxu0 %v657
    %799 = vmatpush1.msra.mxu0 %v656
    %800 = vmatprep.subr.mxu0 %v650
    %801 = vmatpush1.msra.mxu0 %v649
    %802 = vmatprep.subr.mxu0 %v643
    %803 = vmatpush1.msra.mxu0 %v642
    %804 = vmatprep.subr.mxu0 %v636
    %805 = vmatpush1.msra.mxu0 %v635
    %806 = vmatprep.subr.mxu0 %v629
    %807 = vmatpush1.msra.mxu0 %v628
    %808 = vmatprep.subr.mxu0 %v622
    %809 = vmatpush1.msra.mxu0 %v621
    %810 = vmatprep.subr.mxu0 %v615
    %811 = vmatpush1.msra.mxu0 %v614
    %812 = vmatprep.subr.mxu0 %v608
    %813 = vmatpush1.msra.mxu0 %v607
    %814 = vmatprep.subr.mxu0 %v601
    %815 = vmatpush1.msra.mxu0 %v600
    %816 = vmatprep.subr.mxu0 %v594
    %817 = vmatpush1.msra.mxu0 %v593
    %818 = vmatprep.subr.mxu0 %v587
    %819 = vmatpush1.msra.mxu0 %v586
    %820 = vmatprep.subr.mxu0 %v580
    %821 = vmatpush1.msra.mxu0 %v579
    %822 = vmatprep.subr.mxu0 %v573
    %823 = vmatpush1.msra.mxu0 %v572
    %824 = vmatprep.subr.mxu0 %v566
    %825 = vmatpush1.msra.mxu0 %v565
    %826 = vmatprep.subr.mxu0 %v559
    %827 = vmatpush1.msra.mxu0 %v558
    %828 = vmatprep.subr.mxu0 0.0
    %829 = vmatpush2.msra.mxu0 0.0
    %830 = vmatprep.subr.mxu0 0.0
    %831 = vmatpush2.msra.mxu0 0.0
    %832 = vmatprep.subr.mxu0 0.0
    %833 = vmatpush2.msra.mxu0 0.0
    %834 = vmatprep.subr.mxu0 0.0
    %835 = vmatpush2.msra.mxu0 0.0
    %836 = vmatprep.subr.mxu0 0.0
    %837 = vmatpush2.msra.mxu0 0.0
    %838 = vmatprep.subr.mxu0 0.0
    %839 = vmatpush2.msra.mxu0 0.0
    %840 = vmatprep.subr.mxu0 0.0
    %841 = vmatpush2.msra.mxu0 0.0
    %842 = vmatprep.subr.mxu0 0.0
    %843 = vmatpush2.msra.mxu0 0.0
    %844 = vmatprep.subr.mxu0 0.0
    %845 = vmatpush2.msra.mxu0 0.0
    %846 = vmatprep.subr.mxu0 0.0
    %847 = vmatpush2.msra.mxu0 0.0
    %848 = vmatprep.subr.mxu0 0.0
    %849 = vmatpush2.msra.mxu0 0.0
    %850 = vmatprep.subr.mxu0 0.0
    %851 = vmatpush2.msra.mxu0 0.0
    %852 = vmatprep.subr.mxu0 0.0
    %853 = vmatpush2.msra.mxu0 0.0
    %854 = vmatprep.subr.mxu0 0.0
    %855 = vmatpush2.msra.mxu0 0.0
    %856 = vmatprep.subr.mxu0 %v678
    %857 = vmatpush2.msra.mxu0 %v677
    %858 = vmatprep.subr.mxu0 %v671
    %859 = vmatpush2.msra.mxu0 %v670
    %860 = vmatprep.mubr.f32.mxu0 %v723
    %861 = vmatmul.mubr.f32.gmra.mxu0 %v332
    %v862 = vpop.f32.mrf.mxu0
    %v863 = vadd.f32 %v792, %v862
    %v864 = vpop.f32.mrf.mxu0
    %v865 = vadd.f32 %v794, %v864
    %866 = vdwg.mxu0
    %867 = vmatprep.subr.mxu0 %v442
    %868 = vmatpush1.msra.mxu0 %v441
    %869 = vmatprep.subr.mxu0 %v435
    %870 = vmatpush1.msra.mxu0 %v434
    %871 = vmatprep.subr.mxu0 %v428
    %872 = vmatpush1.msra.mxu0 %v427
    %873 = vmatprep.subr.mxu0 %v421
    %874 = vmatpush1.msra.mxu0 %v420
    %875 = vmatprep.subr.mxu0 %v414
    %876 = vmatpush1.msra.mxu0 %v413
    %877 = vmatprep.subr.mxu0 %v407
    %878 = vmatpush1.msra.mxu0 %v406
    %879 = vmatprep.subr.mxu0 %v400
    %880 = vmatpush1.msra.mxu0 %v399
    %881 = vmatprep.subr.mxu0 %v393
    %882 = vmatpush1.msra.mxu0 %v392
    %883 = vmatprep.subr.mxu0 %v386
    %884 = vmatpush1.msra.mxu0 %v385
    %885 = vmatprep.subr.mxu0 %v379
    %886 = vmatpush1.msra.mxu0 %v378
    %887 = vmatprep.subr.mxu0 %v372
    %888 = vmatpush1.msra.mxu0 %v371
    %889 = vmatprep.subr.mxu0 %v365
    %890 = vmatpush1.msra.mxu0 %v364
    %891 = vmatprep.subr.mxu0 %v358
    %892 = vmatpush1.msra.mxu0 %v357
    %893 = vmatprep.subr.mxu0 %v351
    %894 = vmatpush1.msra.mxu0 %v350
    %895 = vmatprep.subr.mxu0 %v344
    %896 = vmatpush1.msra.mxu0 %v343
    %897 = vmatprep.subr.mxu0 %v337
    %898 = vmatpush1.msra.mxu0 %v336
    %899 = vmatprep.subr.mxu0 %v554
    %900 = vmatpush2.msra.mxu0 %v553
    %901 = vmatprep.subr.mxu0 %v547
    %902 = vmatpush2.msra.mxu0 %v546
    %903 = vmatprep.subr.mxu0 %v540
    %904 = vmatpush2.msra.mxu0 %v539
    %905 = vmatprep.subr.mxu0 %v533
    %906 = vmatpush2.msra.mxu0 %v532
    %907 = vmatprep.subr.mxu0 %v526
    %908 = vmatpush2.msra.mxu0 %v525
    %909 = vmatprep.subr.mxu0 %v519
    %910 = vmatpush2.msra.mxu0 %v518
    %911 = vmatprep.subr.mxu0 %v512
    %912 = vmatpush2.msra.mxu0 %v511
    %913 = vmatprep.subr.mxu0 %v505
    %914 = vmatpush2.msra.mxu0 %v504
    %915 = vmatprep.subr.mxu0 %v498
    %916 = vmatpush2.msra.mxu0 %v497
    %917 = vmatprep.subr.mxu0 %v491
    %918 = vmatpush2.msra.mxu0 %v490
    %919 = vmatprep.subr.mxu0 %v484
    %920 = vmatpush2.msra.mxu0 %v483
    %921 = vmatprep.subr.mxu0 %v477
    %922 = vmatpush2.msra.mxu0 %v476
    %923 = vmatprep.subr.mxu0 %v470
    %924 = vmatpush2.msra.mxu0 %v469
    %925 = vmatprep.subr.mxu0 %v463
    %926 = vmatpush2.msra.mxu0 %v462
    %927 = vmatprep.subr.mxu0 %v456
    %928 = vmatpush2.msra.mxu0 %v455
    %929 = vmatprep.subr.mxu0 %v449
    %930 = vmatpush2.msra.mxu0 %v448
    %931 = vmatprep.mubr.f32.mxu0 %v331
    %932 = vmatmul.mubr.f32.gmra.mxu0 %v330
    %v933 = vpop.f32.mrf.mxu0
    %v934 = vadd.f32 %v697, %v933
    %v935 = vpop.f32.mrf.mxu0
    %v936 = vadd.f32 %v701, %v935
    %937 = vdwg.mxu0
    %938 = vmatprep.subr.mxu0 %v666
    %939 = vmatpush1.msra.mxu0 %v665
    %940 = vmatprep.subr.mxu0 %v659
    %941 = vmatpush1.msra.mxu0 %v658
    %942 = vmatprep.subr.mxu0 %v652
    %943 = vmatpush1.msra.mxu0 %v651
    %944 = vmatprep.subr.mxu0 %v645
    %945 = vmatpush1.msra.mxu0 %v644
    %946 = vmatprep.subr.mxu0 %v638
    %947 = vmatpush1.msra.mxu0 %v637
    %948 = vmatprep.subr.mxu0 %v631
    %949 = vmatpush1.msra.mxu0 %v630
    %950 = vmatprep.subr.mxu0 %v624
    %951 = vmatpush1.msra.mxu0 %v623
    %952 = vmatprep.subr.mxu0 %v617
    %953 = vmatpush1.msra.mxu0 %v616
    %954 = vmatprep.subr.mxu0 %v610
    %955 = vmatpush1.msra.mxu0 %v609
    %956 = vmatprep.subr.mxu0 %v603
    %957 = vmatpush1.msra.mxu0 %v602
    %958 = vmatprep.subr.mxu0 %v596
    %959 = vmatpush1.msra.mxu0 %v595
    %960 = vmatprep.subr.mxu0 %v589
    %961 = vmatpush1.msra.mxu0 %v588
    %962 = vmatprep.subr.mxu0 %v582
    %963 = vmatpush1.msra.mxu0 %v581
    %964 = vmatprep.subr.mxu0 %v575
    %965 = vmatpush1.msra.mxu0 %v574
    %966 = vmatprep.subr.mxu0 %v568
    %967 = vmatpush1.msra.mxu0 %v567
    %968 = vmatprep.subr.mxu0 %v561
    %969 = vmatpush1.msra.mxu0 %v560
    %970 = vmatprep.subr.mxu0 0.0
    %971 = vmatpush2.msra.mxu0 0.0
    %972 = vmatprep.subr.mxu0 0.0
    %973 = vmatpush2.msra.mxu0 0.0
    %974 = vmatprep.subr.mxu0 0.0
    %975 = vmatpush2.msra.mxu0 0.0
    %976 = vmatprep.subr.mxu0 0.0
    %977 = vmatpush2.msra.mxu0 0.0
    %978 = vmatprep.subr.mxu0 0.0
    %979 = vmatpush2.msra.mxu0 0.0
    %980 = vmatprep.subr.mxu0 0.0
    %981 = vmatpush2.msra.mxu0 0.0
    %982 = vmatprep.subr.mxu0 0.0
    %983 = vmatpush2.msra.mxu0 0.0
    %984 = vmatprep.subr.mxu0 0.0
    %985 = vmatpush2.msra.mxu0 0.0
    %986 = vmatprep.subr.mxu0 0.0
    %987 = vmatpush2.msra.mxu0 0.0
    %988 = vmatprep.subr.mxu0 0.0
    %989 = vmatpush2.msra.mxu0 0.0
    %990 = vmatprep.subr.mxu0 0.0
    %991 = vmatpush2.msra.mxu0 0.0
    %992 = vmatprep.subr.mxu0 0.0
    %993 = vmatpush2.msra.mxu0 0.0
    %994 = vmatprep.subr.mxu0 0.0
    %995 = vmatpush2.msra.mxu0 0.0
    %996 = vmatprep.subr.mxu0 0.0
    %997 = vmatpush2.msra.mxu0 0.0
    %998 = vmatprep.subr.mxu0 %v680
    %999 = vmatpush2.msra.mxu0 %v679
    %1000 = vmatprep.subr.mxu0 %v673
    %1001 = vmatpush2.msra.mxu0 %v672
    %1002 = vmatprep.mubr.f32.mxu0 %v723
    %1003 = vmatmul.mubr.f32.gmra.mxu0 %v332
    %v1004 = vpop.f32.mrf.mxu0
    %v1005 = vadd.f32 %v934, %v1004
    %v1006 = vpop.f32.mrf.mxu0
    %v1007 = vadd.f32 %v936, %v1006
    %1008 = vdwg.mxu0
    %1009 = vmatprep.subr.mxu0 %v444
    %1010 = vmatpush1.msra.mxu0 %v443
    %1011 = vmatprep.subr.mxu0 %v437
    %1012 = vmatpush1.msra.mxu0 %v436
    %1013 = vmatprep.subr.mxu0 %v430
    %1014 = vmatpush1.msra.mxu0 %v429
    %1015 = vmatprep.subr.mxu0 %v423
    %1016 = vmatpush1.msra.mxu0 %v422
    %1017 = vmatprep.subr.mxu0 %v416
    %1018 = vmatpush1.msra.mxu0 %v415
    %1019 = vmatprep.subr.mxu0 %v409
    %1020 = vmatpush1.msra.mxu0 %v408
    %1021 = vmatprep.subr.mxu0 %v402
    %1022 = vmatpush1.msra.mxu0 %v401
    %1023 = vmatprep.subr.mxu0 %v395
    %1024 = vmatpush1.msra.mxu0 %v394
    %1025 = vmatprep.subr.mxu0 %v388
    %1026 = vmatpush1.msra.mxu0 %v387
    %1027 = vmatprep.subr.mxu0 %v381
    %1028 = vmatpush1.msra.mxu0 %v380
    %1029 = vmatprep.subr.mxu0 %v374
    %1030 = vmatpush1.msra.mxu0 %v373
    %1031 = vmatprep.subr.mxu0 %v367
    %1032 = vmatpush1.msra.mxu0 %v366
    %1033 = vmatprep.subr.mxu0 %v360
    %1034 = vmatpush1.msra.mxu0 %v359
    %1035 = vmatprep.subr.mxu0 %v353
    %1036 = vmatpush1.msra.mxu0 %v352
    %1037 = vmatprep.subr.mxu0 %v346
    %1038 = vmatpush1.msra.mxu0 %v345
    %1039 = vmatprep.subr.mxu0 %v339
    %1040 = vmatpush1.msra.mxu0 %v338
    %1041 = vmatprep.subr.mxu0 %v556
    %1042 = vmatpush2.msra.mxu0 %v555
    %1043 = vmatprep.subr.mxu0 %v549
    %1044 = vmatpush2.msra.mxu0 %v548
    %1045 = vmatprep.subr.mxu0 %v542
    %1046 = vmatpush2.msra.mxu0 %v541
    %1047 = vmatprep.subr.mxu0 %v535
    %1048 = vmatpush2.msra.mxu0 %v534
    %1049 = vmatprep.subr.mxu0 %v528
    %1050 = vmatpush2.msra.mxu0 %v527
    %1051 = vmatprep.subr.mxu0 %v521
    %1052 = vmatpush2.msra.mxu0 %v520
    %1053 = vmatprep.subr.mxu0 %v514
    %1054 = vmatpush2.msra.mxu0 %v513
    %1055 = vmatprep.subr.mxu0 %v507
    %1056 = vmatpush2.msra.mxu0 %v506
    %1057 = vmatprep.subr.mxu0 %v500
    %1058 = vmatpush2.msra.mxu0 %v499
    %1059 = vmatprep.subr.mxu0 %v493
    %1060 = vmatpush2.msra.mxu0 %v492
    %1061 = vmatprep.subr.mxu0 %v486
    %1062 = vmatpush2.msra.mxu0 %v485
    %1063 = vmatprep.subr.mxu0 %v479
    %1064 = vmatpush2.msra.mxu0 %v478
    %1065 = vmatprep.subr.mxu0 %v472
    %1066 = vmatpush2.msra.mxu0 %v471
    %1067 = vmatprep.subr.mxu0 %v465
    %1068 = vmatpush2.msra.mxu0 %v464
    %1069 = vmatprep.subr.mxu0 %v458
    %1070 = vmatpush2.msra.mxu0 %v457
    %1071 = vmatprep.subr.mxu0 %v451
    %1072 = vmatpush2.msra.mxu0 %v450
    %1073 = vmatprep.mubr.f32.mxu0 %v331
    %1074 = vmatmul.mubr.f32.gmra.mxu0 %v330
    %v1075 = vpop.f32.mrf.mxu0
    %v1076 = vadd.f32 %v705, %v1075
    %v1077 = vpop.f32.mrf.mxu0
    %v1078 = vadd.f32 %v709, %v1077
    %1079 = vdwg.mxu0
    %1080 = vmatprep.subr.mxu0 %v668
    %1081 = vmatpush1.msra.mxu0 %v667
    %1082 = vmatprep.subr.mxu0 %v661
    %1083 = vmatpush1.msra.mxu0 %v660
    %1084 = vmatprep.subr.mxu0 %v654
    %1085 = vmatpush1.msra.mxu0 %v653
    %1086 = vmatprep.subr.mxu0 %v647
    %1087 = vmatpush1.msra.mxu0 %v646
    %1088 = vmatprep.subr.mxu0 %v640
    %1089 = vmatpush1.msra.mxu0 %v639
    %1090 = vmatprep.subr.mxu0 %v633
    %1091 = vmatpush1.msra.mxu0 %v632
    %1092 = vmatprep.subr.mxu0 %v626
    %1093 = vmatpush1.msra.mxu0 %v625
    %1094 = vmatprep.subr.mxu0 %v619
    %1095 = vmatpush1.msra.mxu0 %v618
    %1096 = vmatprep.subr.mxu0 %v612
    %1097 = vmatpush1.msra.mxu0 %v611
    %1098 = vmatprep.subr.mxu0 %v605
    %1099 = vmatpush1.msra.mxu0 %v604
    %1100 = vmatprep.subr.mxu0 %v598
    %1101 = vmatpush1.msra.mxu0 %v597
    %1102 = vmatprep.subr.mxu0 %v591
    %1103 = vmatpush1.msra.mxu0 %v590
    %1104 = vmatprep.subr.mxu0 %v584
    %1105 = vmatpush1.msra.mxu0 %v583
    %1106 = vmatprep.subr.mxu0 %v577
    %1107 = vmatpush1.msra.mxu0 %v576
    %1108 = vmatprep.subr.mxu0 %v570
    %1109 = vmatpush1.msra.mxu0 %v569
    %1110 = vmatprep.subr.mxu0 %v563
    %1111 = vmatpush1.msra.mxu0 %v562
    %1112 = vmatprep.subr.mxu0 0.0
    %1113 = vmatpush2.msra.mxu0 0.0
    %1114 = vmatprep.subr.mxu0 0.0
    %1115 = vmatpush2.msra.mxu0 0.0
    %1116 = vmatprep.subr.mxu0 0.0
    %1117 = vmatpush2.msra.mxu0 0.0
    %1118 = vmatprep.subr.mxu0 0.0
    %1119 = vmatpush2.msra.mxu0 0.0
    %1120 = vmatprep.subr.mxu0 0.0
    %1121 = vmatpush2.msra.mxu0 0.0
    %1122 = vmatprep.subr.mxu0 0.0
    %1123 = vmatpush2.msra.mxu0 0.0
    %1124 = vmatprep.subr.mxu0 0.0
    %1125 = vmatpush2.msra.mxu0 0.0
    %1126 = vmatprep.subr.mxu0 0.0
    %1127 = vmatpush2.msra.mxu0 0.0
    %1128 = vmatprep.subr.mxu0 0.0
    %1129 = vmatpush2.msra.mxu0 0.0
    %1130 = vmatprep.subr.mxu0 0.0
    %1131 = vmatpush2.msra.mxu0 0.0
    %1132 = vmatprep.subr.mxu0 0.0
    %1133 = vmatpush2.msra.mxu0 0.0
    %1134 = vmatprep.subr.mxu0 0.0
    %1135 = vmatpush2.msra.mxu0 0.0
    %1136 = vmatprep.subr.mxu0 0.0
    %1137 = vmatpush2.msra.mxu0 0.0
    %1138 = vmatprep.subr.mxu0 0.0
    %1139 = vmatpush2.msra.mxu0 0.0
    %1140 = vmatprep.subr.mxu0 %v682
    %1141 = vmatpush2.msra.mxu0 %v681
    %1142 = vmatprep.subr.mxu0 %v675
    %1143 = vmatpush2.msra.mxu0 %v674
    %1144 = vmatprep.mubr.f32.mxu0 %v723
    %1145 = vmatmul.mubr.f32.gmra.mxu0 %v332
    %v1146 = vpop.f32.mrf.mxu0
    %v1147 = vadd.f32 %v1076, %v1146
    %v1148 = vpop.f32.mrf.mxu0
    %v1149 = vadd.f32 %v1078, %v1148
    %1150 = vdwg.mxu0
    %1151 = vmatprep.subr.mxu0 0.0
    %1152 = vmatpush1.msra.mxu0 %v445
    %1153 = vmatprep.subr.mxu0 0.0
    %1154 = vmatpush1.msra.mxu0 %v438
    %1155 = vmatprep.subr.mxu0 0.0
    %1156 = vmatpush1.msra.mxu0 %v431
    %1157 = vmatprep.subr.mxu0 0.0
    %1158 = vmatpush1.msra.mxu0 %v424
    %1159 = vmatprep.subr.mxu0 0.0
    %1160 = vmatpush1.msra.mxu0 %v417
    %1161 = vmatprep.subr.mxu0 0.0
    %1162 = vmatpush1.msra.mxu0 %v410
    %1163 = vmatprep.subr.mxu0 0.0
    %1164 = vmatpush1.msra.mxu0 %v403
    %1165 = vmatprep.subr.mxu0 0.0
    %1166 = vmatpush1.msra.mxu0 %v396
    %1167 = vmatprep.subr.mxu0 0.0
    %1168 = vmatpush1.msra.mxu0 %v389
    %1169 = vmatprep.subr.mxu0 0.0
    %1170 = vmatpush1.msra.mxu0 %v382
    %1171 = vmatprep.subr.mxu0 0.0
    %1172 = vmatpush1.msra.mxu0 %v375
    %1173 = vmatprep.subr.mxu0 0.0
    %1174 = vmatpush1.msra.mxu0 %v368
    %1175 = vmatprep.subr.mxu0 0.0
    %1176 = vmatpush1.msra.mxu0 %v361
    %1177 = vmatprep.subr.mxu0 0.0
    %1178 = vmatpush1.msra.mxu0 %v354
    %1179 = vmatprep.subr.mxu0 0.0
    %1180 = vmatpush1.msra.mxu0 %v347
    %1181 = vmatprep.subr.mxu0 0.0
    %1182 = vmatpush1.msra.mxu0 %v340
    %1183 = vmatprep.subr.mxu0 0.0
    %1184 = vmatpush2.msra.mxu0 %v557
    %1185 = vmatprep.subr.mxu0 0.0
    %1186 = vmatpush2.msra.mxu0 %v550
    %1187 = vmatprep.subr.mxu0 0.0
    %1188 = vmatpush2.msra.mxu0 %v543
    %1189 = vmatprep.subr.mxu0 0.0
    %1190 = vmatpush2.msra.mxu0 %v536
    %1191 = vmatprep.subr.mxu0 0.0
    %1192 = vmatpush2.msra.mxu0 %v529
    %1193 = vmatprep.subr.mxu0 0.0
    %1194 = vmatpush2.msra.mxu0 %v522
    %1195 = vmatprep.subr.mxu0 0.0
    %1196 = vmatpush2.msra.mxu0 %v515
    %1197 = vmatprep.subr.mxu0 0.0
    %1198 = vmatpush2.msra.mxu0 %v508
    %1199 = vmatprep.subr.mxu0 0.0
    %1200 = vmatpush2.msra.mxu0 %v501
    %1201 = vmatprep.subr.mxu0 0.0
    %1202 = vmatpush2.msra.mxu0 %v494
    %1203 = vmatprep.subr.mxu0 0.0
    %1204 = vmatpush2.msra.mxu0 %v487
    %1205 = vmatprep.subr.mxu0 0.0
    %1206 = vmatpush2.msra.mxu0 %v480
    %1207 = vmatprep.subr.mxu0 0.0
    %1208 = vmatpush2.msra.mxu0 %v473
    %1209 = vmatprep.subr.mxu0 0.0
    %1210 = vmatpush2.msra.mxu0 %v466
    %1211 = vmatprep.subr.mxu0 0.0
    %1212 = vmatpush2.msra.mxu0 %v459
    %1213 = vmatprep.subr.mxu0 0.0
    %1214 = vmatpush2.msra.mxu0 %v452
    %1215 = vmatprep.mubr.f32.mxu0 %v331
    %1216 = vmatmul.mubr.f32.gmra.mxu0 %v330
    %v1217 = vpop.f32.mrf.mxu0
    %v1218 = vadd.f32 %v713, %v1217
    %v1219 = vpop.f32.mrf.mxu0
    %1220 = vdwg.mxu0
    %1221 = vmatprep.subr.mxu0 0.0
    %1222 = vmatpush1.msra.mxu0 %v669
    %1223 = vmatprep.subr.mxu0 0.0
    %1224 = vmatpush1.msra.mxu0 %v662
    %1225 = vmatprep.subr.mxu0 0.0
    %1226 = vmatpush1.msra.mxu0 %v655
    %1227 = vmatprep.subr.mxu0 0.0
    %1228 = vmatpush1.msra.mxu0 %v648
    %1229 = vmatprep.subr.mxu0 0.0
    %1230 = vmatpush1.msra.mxu0 %v641
    %1231 = vmatprep.subr.mxu0 0.0
    %1232 = vmatpush1.msra.mxu0 %v634
    %1233 = vmatprep.subr.mxu0 0.0
    %1234 = vmatpush1.msra.mxu0 %v627
    %1235 = vmatprep.subr.mxu0 0.0
    %1236 = vmatpush1.msra.mxu0 %v620
    %1237 = vmatprep.subr.mxu0 0.0
    %1238 = vmatpush1.msra.mxu0 %v613
    %1239 = vmatprep.subr.mxu0 0.0
    %1240 = vmatpush1.msra.mxu0 %v606
    %1241 = vmatprep.subr.mxu0 0.0
    %1242 = vmatpush1.msra.mxu0 %v599
    %1243 = vmatprep.subr.mxu0 0.0
    %1244 = vmatpush1.msra.mxu0 %v592
    %1245 = vmatprep.subr.mxu0 0.0
    %1246 = vmatpush1.msra.mxu0 %v585
    %1247 = vmatprep.subr.mxu0 0.0
    %1248 = vmatpush1.msra.mxu0 %v578
    %1249 = vmatprep.subr.mxu0 0.0
    %1250 = vmatpush1.msra.mxu0 %v571
    %1251 = vmatprep.subr.mxu0 0.0
    %1252 = vmatpush1.msra.mxu0 %v564
    %1253 = vmatprep.subr.mxu0 0.0
    %1254 = vmatpush2.msra.mxu0 0.0
    %1255 = vmatprep.subr.mxu0 0.0
    %1256 = vmatpush2.msra.mxu0 0.0
    %1257 = vmatprep.subr.mxu0 0.0
    %1258 = vmatpush2.msra.mxu0 0.0
    %1259 = vmatprep.subr.mxu0 0.0
    %1260 = vmatpush2.msra.mxu0 0.0
    %1261 = vmatprep.subr.mxu0 0.0
    %1262 = vmatpush2.msra.mxu0 0.0
    %1263 = vmatprep.subr.mxu0 0.0
    %1264 = vmatpush2.msra.mxu0 0.0
    %1265 = vmatprep.subr.mxu0 0.0
    %1266 = vmatpush2.msra.mxu0 0.0
    %1267 = vmatprep.subr.mxu0 0.0
    %1268 = vmatpush2.msra.mxu0 0.0
    %1269 = vmatprep.subr.mxu0 0.0
    %1270 = vmatpush2.msra.mxu0 0.0
    %1271 = vmatprep.subr.mxu0 0.0
    %1272 = vmatpush2.msra.mxu0 0.0
    %1273 = vmatprep.subr.mxu0 0.0
    %1274 = vmatpush2.msra.mxu0 0.0
    %1275 = vmatprep.subr.mxu0 0.0
    %1276 = vmatpush2.msra.mxu0 0.0
    %1277 = vmatprep.subr.mxu0 0.0
    %1278 = vmatpush2.msra.mxu0 0.0
    %1279 = vmatprep.subr.mxu0 0.0
    %1280 = vmatpush2.msra.mxu0 0.0
    %1281 = vmatprep.subr.mxu0 0.0
    %1282 = vmatpush2.msra.mxu0 %v683
    %1283 = vmatprep.subr.mxu0 0.0
    %1284 = vmatpush2.msra.mxu0 %v676
    %1285 = vmatprep.mubr.f32.mxu0 %v723
    %1286 = vmatmul.mubr.f32.gmra.mxu0 %v332
    %v1287 = vpop.f32.mrf.mxu0
    %v1288 = vadd.f32 %v1218, %v1287
    %v1289 = vpop.f32.mrf.mxu0
    %1290 = vdwg.mxu0
    %v1291 = vmax.f32 %v863, 0.0
    %v1292 = vmax.f32 %v865, 0.0
    %v1293 = vmax.f32 %v1005, 0.0
    %v1294 = vmax.f32 %v1007, 0.0
    %v1295 = vmax.f32 %v1147, 0.0
    %v1296 = vmax.f32 %v1149, 0.0
    %v1297 = vmax.f32 %v1288, 0.0
    %v1298 = vld [vmem:[#allocation10] sm:$0xff]
    %v1299 = vld [vmem:[#allocation10 + $0x8] sm:$0xff]
    %v1300 = vld [vmem:[#allocation10 + $0x10] sm:$0xff]
    %v1301 = vld [vmem:[#allocation10 + $0x18] sm:$0xff]
    %v1302 = vld [vmem:[#allocation10 + $0x20] sm:$0xff]
    %v1303 = vld [vmem:[#allocation10 + $0x28] sm:$0xff]
    %v1304 = vld [vmem:[#allocation10 + $0x30] sm:$0xff]
    %v1305 = vld [vmem:[#allocation10 + $0x38] sm:$0xff]
    %v1306 = vld [vmem:[#allocation10 + $0x40] sm:$0xff]
    %v1307 = vld [vmem:[#allocation10 + $0x48] sm:$0xff]
    %v1308 = vld [vmem:[#allocation10 + $0x50] sm:$0xff]
    %v1309 = vld [vmem:[#allocation10 + $0x58] sm:$0xff]
    %v1310 = vld [vmem:[#allocation10 + $0x60] sm:$0xff]
    %v1311 = vld [vmem:[#allocation10 + $0x68] sm:$0xff]
    %v1312 = vld [vmem:[#allocation10 + $0x70] sm:$0xff]
    %v1313 = vld [vmem:[#allocation10 + $0x78] sm:$0xff]
    %v1314 = vld [vmem:[#allocation10 + $0x80] sm:$0xff]
    %v1315 = vld [vmem:[#allocation10 + $0x88] sm:$0xff]
    %v1316 = vld [vmem:[#allocation10 + $0x90] sm:$0xff]
    %v1317 = vld [vmem:[#allocation10 + $0x98] sm:$0xff]
    %v1318 = vld [vmem:[#allocation10 + $0xa0] sm:$0xff]
    %v1319 = vld [vmem:[#allocation10 + $0xa8] sm:$0xff]
    %v1320 = vld [vmem:[#allocation10 + $0xb0] sm:$0xff]
    %v1321 = vld [vmem:[#allocation10 + $0xb8] sm:$0xff]
    %v1322 = vld [vmem:[#allocation10 + $0xc0] sm:$0xff]
    %v1323 = vld [vmem:[#allocation10 + $0xc8] sm:$0xff]
    %v1324 = vld [vmem:[#allocation10 + $0xd0] sm:$0xff]
    %v1325 = vld [vmem:[#allocation10 + $0xd8] sm:$0xff]
    %v1326 = vld [vmem:[#allocation10 + $0xe0] sm:$0xff]
    %v1327 = vld [vmem:[#allocation10 + $0xe8] sm:$0xff]
    %v1328 = vld [vmem:[#allocation10 + $0xf0] sm:$0xff]
    %v1329 = vld [vmem:[#allocation10 + $0xf8] sm:$0xff]
    %v1330 = vld [vmem:[#allocation10 + $0x100] sm:$0xff]
    %v1331 = vld [vmem:[#allocation10 + $0x108] sm:$0xff]
    %v1332 = vld [vmem:[#allocation10 + $0x110] sm:$0xff]
    %v1333 = vld [vmem:[#allocation10 + $0x118] sm:$0xff]
    %v1334 = vld [vmem:[#allocation10 + $0x120] sm:$0xff]
    %v1335 = vld [vmem:[#allocation10 + $0x128] sm:$0xff]
    %v1336 = vld [vmem:[#allocation10 + $0x130] sm:$0xff]
    %v1337 = vld [vmem:[#allocation10 + $0x138] sm:$0xff]
    %v1338 = vld [vmem:[#allocation10 + $0x140] sm:$0xff]
    %v1339 = vld [vmem:[#allocation10 + $0x148] sm:$0xff]
    %v1340 = vld [vmem:[#allocation10 + $0x150] sm:$0xff]
    %v1341 = vld [vmem:[#allocation10 + $0x158] sm:$0xff]
    %v1342 = vld [vmem:[#allocation10 + $0x160] sm:$0xff]
    %v1343 = vld [vmem:[#allocation10 + $0x168] sm:$0xff]
    %v1344 = vld [vmem:[#allocation10 + $0x170] sm:$0xff]
    %v1345 = vld [vmem:[#allocation10 + $0x178] sm:$0xff]
    %v1346 = vld [vmem:[#allocation10 + $0x180] sm:$0xff]
    %v1347 = vld [vmem:[#allocation10 + $0x188] sm:$0xff]
    %v1348 = vld [vmem:[#allocation10 + $0x190] sm:$0xff]
    %v1349 = vld [vmem:[#allocation10 + $0x198] sm:$0xff]
    %v1350 = vld [vmem:[#allocation10 + $0x1a0] sm:$0xff]
    %v1351 = vld [vmem:[#allocation10 + $0x1a8] sm:$0xff]
    %v1352 = vld [vmem:[#allocation10 + $0x1b0] sm:$0xff]
    %v1353 = vld [vmem:[#allocation10 + $0x1b8] sm:$0xff]
    %v1354 = vld [vmem:[#allocation10 + $0x1c0] sm:$0xff]
    %v1355 = vld [vmem:[#allocation10 + $0x1c8] sm:$0xff]
    %v1356 = vld [vmem:[#allocation10 + $0x1d0] sm:$0xff]
    %v1357 = vld [vmem:[#allocation10 + $0x1d8] sm:$0xff]
    %v1358 = vld [vmem:[#allocation10 + $0x1e0] sm:$0xff]
    %v1359 = vld [vmem:[#allocation10 + $0x1e8] sm:$0xff]
    %v1360 = vld [vmem:[#allocation10 + $0x1f0] sm:$0xff]
    %v1361 = vld [vmem:[#allocation10 + $0x1f8] sm:$0xff]
    %v1362 = vld [vmem:[#allocation10 + $0x200] sm:$0xff]
    %v1363 = vld [vmem:[#allocation10 + $0x208] sm:$0xff]
    %v1364 = vld [vmem:[#allocation10 + $0x210] sm:$0xff]
    %v1365 = vld [vmem:[#allocation10 + $0x218] sm:$0xff]
    %v1366 = vld [vmem:[#allocation10 + $0x220] sm:$0xff]
    %v1367 = vld [vmem:[#allocation10 + $0x228] sm:$0xff]
    %v1368 = vld [vmem:[#allocation10 + $0x230] sm:$0xff]
    %v1369 = vld [vmem:[#allocation10 + $0x238] sm:$0xff]
    %v1370 = vld [vmem:[#allocation10 + $0x240] sm:$0xff]
    %v1371 = vld [vmem:[#allocation10 + $0x248] sm:$0xff]
    %v1372 = vld [vmem:[#allocation10 + $0x250] sm:$0xff]
    %v1373 = vld [vmem:[#allocation10 + $0x258] sm:$0xff]
    %v1374 = vld [vmem:[#allocation10 + $0x260] sm:$0xff]
    %v1375 = vld [vmem:[#allocation10 + $0x268] sm:$0xff]
    %v1376 = vld [vmem:[#allocation10 + $0x270] sm:$0xff]
    %v1377 = vld [vmem:[#allocation10 + $0x278] sm:$0xff]
    %v1378 = vld [vmem:[#allocation10 + $0x280] sm:$0xff]
    %v1379 = vld [vmem:[#allocation10 + $0x288] sm:$0xff]
    %v1380 = vld [vmem:[#allocation10 + $0x290] sm:$0xff]
    %v1381 = vld [vmem:[#allocation10 + $0x298] sm:$0xff]
    %v1382 = vld [vmem:[#allocation10 + $0x2a0] sm:$0xff]
    %v1383 = vld [vmem:[#allocation10 + $0x2a8] sm:$0xff]
    %v1384 = vld [vmem:[#allocation10 + $0x2b0] sm:$0xff]
    %v1385 = vld [vmem:[#allocation10 + $0x2b8] sm:$0xff]
    %v1386 = vld [vmem:[#allocation10 + $0x2c0] sm:$0xff]
    %v1387 = vld [vmem:[#allocation10 + $0x2c8] sm:$0xff]
    %v1388 = vld [vmem:[#allocation10 + $0x2d0] sm:$0xff]
    %v1389 = vld [vmem:[#allocation10 + $0x2d8] sm:$0xff]
    %v1390 = vld [vmem:[#allocation10 + $0x2e0] sm:$0xff]
    %v1391 = vld [vmem:[#allocation10 + $0x2e8] sm:$0xff]
    %v1392 = vld [vmem:[#allocation10 + $0x2f0] sm:$0xff]
    %v1393 = vld [vmem:[#allocation10 + $0x2f8] sm:$0xff]
    %v1394 = vld [vmem:[#allocation10 + $0x300] sm:$0xff]
    %v1395 = vld [vmem:[#allocation10 + $0x308] sm:$0xff]
    %v1396 = vld [vmem:[#allocation10 + $0x310] sm:$0xff]
    %v1397 = vld [vmem:[#allocation10 + $0x318] sm:$0xff]
    %v1398 = vld [vmem:[#allocation10 + $0x320] sm:$0xff]
    %v1399 = vld [vmem:[#allocation10 + $0x328] sm:$0xff]
    %v1400 = vld [vmem:[#allocation10 + $0x330] sm:$0xff]
    %v1401 = vld [vmem:[#allocation10 + $0x338] sm:$0xff]
    %v1402 = vld [vmem:[#allocation10 + $0x340] sm:$0xff]
    %v1403 = vld [vmem:[#allocation10 + $0x348] sm:$0xff]
    %v1404 = vld [vmem:[#allocation10 + $0x350] sm:$0xff]
    %v1405 = vld [vmem:[#allocation10 + $0x358] sm:$0xff]
    %v1406 = vld [vmem:[#allocation10 + $0x360] sm:$0xff]
    %v1407 = vld [vmem:[#allocation10 + $0x368] sm:$0xff]
    %v1408 = vld [vmem:[#allocation10 + $0x370] sm:$0xff]
    %v1409 = vld [vmem:[#allocation10 + $0x378] sm:$0xff]
    %v1410 = vld [vmem:[#allocation10 + $0x380] sm:$0xff]
    %v1411 = vld [vmem:[#allocation10 + $0x388] sm:$0xff]
    %v1412 = vld [vmem:[#allocation10 + $0x390] sm:$0xff]
    %v1413 = vld [vmem:[#allocation10 + $0x398] sm:$0xff]
    %v1414 = vld [vmem:[#allocation10 + $0x3a0] sm:$0xff]
    %v1415 = vld [vmem:[#allocation10 + $0x3a8] sm:$0xff]
    %v1416 = vld [vmem:[#allocation10 + $0x3b0] sm:$0xff]
    %v1417 = vld [vmem:[#allocation10 + $0x3b8] sm:$0xff]
    %v1418 = vld [vmem:[#allocation10 + $0x3c0] sm:$0xff]
    %v1419 = vld [vmem:[#allocation10 + $0x3c8] sm:$0xff]
    %v1420 = vld [vmem:[#allocation10 + $0x3d0] sm:$0xff]
    %v1421 = vld [vmem:[#allocation10 + $0x3d8] sm:$0xff]
    %v1422 = vld [vmem:[#allocation10 + $0x3e0] sm:$0xff]
    %v1423 = vld [vmem:[#allocation10 + $0x3e8] sm:$0xff]
    %v1424 = vld [vmem:[#allocation10 + $0x3f0] sm:$0xff]
    %v1425 = vld [vmem:[#allocation10 + $0x3f8] sm:$0xff]
    %v1426 = vld [vmem:[#allocation10 + $0x400] sm:$0xff]
    %v1427 = vld [vmem:[#allocation10 + $0x408] sm:$0xff]
    %v1428 = vld [vmem:[#allocation10 + $0x410] sm:$0xff]
    %v1429 = vld [vmem:[#allocation10 + $0x418] sm:$0xff]
    %v1430 = vld [vmem:[#allocation10 + $0x420] sm:$0xff]
    %v1431 = vld [vmem:[#allocation10 + $0x428] sm:$0xff]
    %v1432 = vld [vmem:[#allocation10 + $0x430] sm:$0xff]
    %v1433 = vld [vmem:[#allocation10 + $0x438] sm:$0xff]
    %v1434 = vld [vmem:[#allocation10 + $0x440] sm:$0xff]
    %v1435 = vld [vmem:[#allocation10 + $0x448] sm:$0xff]
    %v1436 = vld [vmem:[#allocation10 + $0x450] sm:$0xff]
    %v1437 = vld [vmem:[#allocation10 + $0x458] sm:$0xff]
    %v1438 = vld [vmem:[#allocation10 + $0x460] sm:$0xff]
    %v1439 = vld [vmem:[#allocation10 + $0x468] sm:$0xff]
    %v1440 = vld [vmem:[#allocation10 + $0x470] sm:$0xff]
    %v1441 = vld [vmem:[#allocation10 + $0x478] sm:$0xff]
    %v1442 = vld [vmem:[#allocation10 + $0x480] sm:$0xff]
    %v1443 = vld [vmem:[#allocation10 + $0x488] sm:$0xff]
    %v1444 = vld [vmem:[#allocation10 + $0x490] sm:$0xff]
    %v1445 = vld [vmem:[#allocation10 + $0x498] sm:$0xff]
    %v1446 = vld [vmem:[#allocation10 + $0x4a0] sm:$0xff]
    %v1447 = vld [vmem:[#allocation10 + $0x4a8] sm:$0xff]
    %v1448 = vld [vmem:[#allocation10 + $0x4b0] sm:$0xff]
    %v1449 = vld [vmem:[#allocation10 + $0x4b8] sm:$0xff]
    %v1450 = vld [vmem:[#allocation10 + $0x4c0] sm:$0xff]
    %v1451 = vld [vmem:[#allocation10 + $0x4c8] sm:$0xff]
    %v1452 = vld [vmem:[#allocation10 + $0x4d0] sm:$0xff]
    %v1453 = vld [vmem:[#allocation10 + $0x4d8] sm:$0xff]
    %v1454 = vld [vmem:[#allocation10 + $0x4e0] sm:$0xff]
    %v1455 = vld [vmem:[#allocation10 + $0x4e8] sm:$0xff]
    %v1456 = vld [vmem:[#allocation10 + $0x4f0] sm:$0xff]
    %v1457 = vld [vmem:[#allocation10 + $0x4f8] sm:$0xff]
    %v1458 = vld [vmem:[#allocation10 + $0x500] sm:$0xff]
    %v1459 = vld [vmem:[#allocation10 + $0x508] sm:$0xff]
    %v1460 = vld [vmem:[#allocation10 + $0x510] sm:$0xff]
    %v1461 = vld [vmem:[#allocation10 + $0x518] sm:$0xff]
    %v1462 = vld [vmem:[#allocation10 + $0x520] sm:$0xff]
    %v1463 = vld [vmem:[#allocation10 + $0x528] sm:$0xff]
    %v1464 = vld [vmem:[#allocation10 + $0x530] sm:$0xff]
    %v1465 = vld [vmem:[#allocation10 + $0x538] sm:$0xff]
    %v1466 = vld [vmem:[#allocation10 + $0x540] sm:$0xff]
    %v1467 = vld [vmem:[#allocation10 + $0x548] sm:$0xff]
    %v1468 = vld [vmem:[#allocation10 + $0x550] sm:$0xff]
    %v1469 = vld [vmem:[#allocation10 + $0x558] sm:$0xff]
    %v1470 = vld [vmem:[#allocation10 + $0x560] sm:$0xff]
    %v1471 = vld [vmem:[#allocation10 + $0x568] sm:$0xff]
    %v1472 = vld [vmem:[#allocation10 + $0x570] sm:$0xff]
    %v1473 = vld [vmem:[#allocation10 + $0x578] sm:$0xff]
    %v1474 = vld [vmem:[#allocation10 + $0x580] sm:$0xff]
    %v1475 = vld [vmem:[#allocation10 + $0x588] sm:$0xff]
    %v1476 = vld [vmem:[#allocation10 + $0x590] sm:$0xff]
    %v1477 = vld [vmem:[#allocation10 + $0x598] sm:$0xff]
    %v1478 = vld [vmem:[#allocation10 + $0x5a0] sm:$0xff]
    %v1479 = vld [vmem:[#allocation10 + $0x5a8] sm:$0xff]
    %v1480 = vld [vmem:[#allocation10 + $0x5b0] sm:$0xff]
    %v1481 = vld [vmem:[#allocation10 + $0x5b8] sm:$0xff]
    %v1482 = vld [vmem:[#allocation10 + $0x5c0] sm:$0xff]
    %v1483 = vld [vmem:[#allocation10 + $0x5c8] sm:$0xff]
    %v1484 = vld [vmem:[#allocation10 + $0x5d0] sm:$0xff]
    %v1485 = vld [vmem:[#allocation10 + $0x5d8] sm:$0xff]
    %v1486 = vld [vmem:[#allocation10 + $0x5e0] sm:$0xff]
    %v1487 = vld [vmem:[#allocation10 + $0x5e8] sm:$0xff]
    %v1488 = vld [vmem:[#allocation10 + $0x5f0] sm:$0xff]
    %v1489 = vld [vmem:[#allocation10 + $0x5f8] sm:$0xff]
    %v1490 = vld [vmem:[#allocation10 + $0x600] sm:$0xff]
    %v1491 = vld [vmem:[#allocation10 + $0x608] sm:$0xff]
    %v1492 = vld [vmem:[#allocation10 + $0x610] sm:$0xff]
    %v1493 = vld [vmem:[#allocation10 + $0x618] sm:$0xff]
    %v1494 = vld [vmem:[#allocation10 + $0x620] sm:$0xff]
    %v1495 = vld [vmem:[#allocation10 + $0x628] sm:$0xff]
    %v1496 = vld [vmem:[#allocation10 + $0x630] sm:$0xff]
    %v1497 = vld [vmem:[#allocation10 + $0x638] sm:$0xff]
    %v1498 = vld [vmem:[#allocation11] sm:$0x3]
    %v1500 = vlaneseq
    %v1501 = vshrl.u32 %v1500, 7
    %v1502 = vsub.s32 0, %v1501
    %v1503 = vrot.slane %v1498, %v1502
    %v1504 = vlaneseq
    %v1505 = vshrl.u32 %v1504, 7
    %v1506 = vsub.s32 1, %v1505
    %v1507 = vrot.slane %v1498, %v1506
    %vm1510 = vcmask 261120
    %v1512 = vsel %vm1510, %v1297, 0
    %1514 = vmatprep.subr.mxu0 %v1329
    %1515 = vmatpush1.msra.mxu0 %v1328
    %1516 = vmatprep.subr.mxu0 %v1327
    %1517 = vmatpush1.msra.mxu0 %v1326
    %1518 = vmatprep.subr.mxu0 %v1325
    %1519 = vmatpush1.msra.mxu0 %v1324
    %1520 = vmatprep.subr.mxu0 %v1323
    %1521 = vmatpush1.msra.mxu0 %v1322
    %1522 = vmatprep.subr.mxu0 %v1321
    %1523 = vmatpush1.msra.mxu0 %v1320
    %1524 = vmatprep.subr.mxu0 %v1319
    %1525 = vmatpush1.msra.mxu0 %v1318
    %1526 = vmatprep.subr.mxu0 %v1317
    %1527 = vmatpush1.msra.mxu0 %v1316
    %1528 = vmatprep.subr.mxu0 %v1315
    %1529 = vmatpush1.msra.mxu0 %v1314
    %1530 = vmatprep.subr.mxu0 %v1313
    %1531 = vmatpush1.msra.mxu0 %v1312
    %1532 = vmatprep.subr.mxu0 %v1311
    %1533 = vmatpush1.msra.mxu0 %v1310
    %1534 = vmatprep.subr.mxu0 %v1309
    %1535 = vmatpush1.msra.mxu0 %v1308
    %1536 = vmatprep.subr.mxu0 %v1307
    %1537 = vmatpush1.msra.mxu0 %v1306
    %1538 = vmatprep.subr.mxu0 %v1305
    %1539 = vmatpush1.msra.mxu0 %v1304
    %1540 = vmatprep.subr.mxu0 %v1303
    %1541 = vmatpush1.msra.mxu0 %v1302
    %1542 = vmatprep.subr.mxu0 %v1301
    %1543 = vmatpush1.msra.mxu0 %v1300
    %1544 = vmatprep.subr.mxu0 %v1299
    %1545 = vmatpush1.msra.mxu0 %v1298
    %1546 = vmatprep.subr.mxu0 %v1361
    %1547 = vmatpush2.msra.mxu0 %v1360
    %1548 = vmatprep.subr.mxu0 %v1359
    %1549 = vmatpush2.msra.mxu0 %v1358
    %1550 = vmatprep.subr.mxu0 %v1357
    %1551 = vmatpush2.msra.mxu0 %v1356
    %1552 = vmatprep.subr.mxu0 %v1355
    %1553 = vmatpush2.msra.mxu0 %v1354
    %1554 = vmatprep.subr.mxu0 %v1353
    %1555 = vmatpush2.msra.mxu0 %v1352
    %1556 = vmatprep.subr.mxu0 %v1351
    %1557 = vmatpush2.msra.mxu0 %v1350
    %1558 = vmatprep.subr.mxu0 %v1349
    %1559 = vmatpush2.msra.mxu0 %v1348
    %1560 = vmatprep.subr.mxu0 %v1347
    %1561 = vmatpush2.msra.mxu0 %v1346
    %1562 = vmatprep.subr.mxu0 %v1345
    %1563 = vmatpush2.msra.mxu0 %v1344
    %1564 = vmatprep.subr.mxu0 %v1343
    %1565 = vmatpush2.msra.mxu0 %v1342
    %1566 = vmatprep.subr.mxu0 %v1341
    %1567 = vmatpush2.msra.mxu0 %v1340
    %1568 = vmatprep.subr.mxu0 %v1339
    %1569 = vmatpush2.msra.mxu0 %v1338
    %1570 = vmatprep.subr.mxu0 %v1337
    %1571 = vmatpush2.msra.mxu0 %v1336
    %1572 = vmatprep.subr.mxu0 %v1335
    %1573 = vmatpush2.msra.mxu0 %v1334
    %1574 = vmatprep.subr.mxu0 %v1333
    %1575 = vmatpush2.msra.mxu0 %v1332
    %1576 = vmatprep.subr.mxu0 %v1331
    %1577 = vmatpush2.msra.mxu0 %v1330
    %1578 = vmatprep.mubr.f32.mxu0 %v1292
    %1579 = vmatmul.mubr.f32.gmra.mxu0 %v1291
    %v1580 = vpop.f32.mrf.mxu0
    %v1581 = vadd.f32 %v1503, %v1580
    %v1582 = vpop.f32.mrf.mxu0
    %v1583 = vadd.f32 %v1507, %v1582
    %1584 = vdwg.mxu0
    %1585 = vmatprep.subr.mxu0 %v1393
    %1586 = vmatpush1.msra.mxu0 %v1392
    %1587 = vmatprep.subr.mxu0 %v1391
    %1588 = vmatpush1.msra.mxu0 %v1390
    %1589 = vmatprep.subr.mxu0 %v1389
    %1590 = vmatpush1.msra.mxu0 %v1388
    %1591 = vmatprep.subr.mxu0 %v1387
    %1592 = vmatpush1.msra.mxu0 %v1386
    %1593 = vmatprep.subr.mxu0 %v1385
    %1594 = vmatpush1.msra.mxu0 %v1384
    %1595 = vmatprep.subr.mxu0 %v1383
    %1596 = vmatpush1.msra.mxu0 %v1382
    %1597 = vmatprep.subr.mxu0 %v1381
    %1598 = vmatpush1.msra.mxu0 %v1380
    %1599 = vmatprep.subr.mxu0 %v1379
    %1600 = vmatpush1.msra.mxu0 %v1378
    %1601 = vmatprep.subr.mxu0 %v1377
    %1602 = vmatpush1.msra.mxu0 %v1376
    %1603 = vmatprep.subr.mxu0 %v1375
    %1604 = vmatpush1.msra.mxu0 %v1374
    %1605 = vmatprep.subr.mxu0 %v1373
    %1606 = vmatpush1.msra.mxu0 %v1372
    %1607 = vmatprep.subr.mxu0 %v1371
    %1608 = vmatpush1.msra.mxu0 %v1370
    %1609 = vmatprep.subr.mxu0 %v1369
    %1610 = vmatpush1.msra.mxu0 %v1368
    %1611 = vmatprep.subr.mxu0 %v1367
    %1612 = vmatpush1.msra.mxu0 %v1366
    %1613 = vmatprep.subr.mxu0 %v1365
    %1614 = vmatpush1.msra.mxu0 %v1364
    %1615 = vmatprep.subr.mxu0 %v1363
    %1616 = vmatpush1.msra.mxu0 %v1362
    %1617 = vmatprep.subr.mxu0 %v1425
    %1618 = vmatpush2.msra.mxu0 %v1424
    %1619 = vmatprep.subr.mxu0 %v1423
    %1620 = vmatpush2.msra.mxu0 %v1422
    %1621 = vmatprep.subr.mxu0 %v1421
    %1622 = vmatpush2.msra.mxu0 %v1420
    %1623 = vmatprep.subr.mxu0 %v1419
    %1624 = vmatpush2.msra.mxu0 %v1418
    %1625 = vmatprep.subr.mxu0 %v1417
    %1626 = vmatpush2.msra.mxu0 %v1416
    %1627 = vmatprep.subr.mxu0 %v1415
    %1628 = vmatpush2.msra.mxu0 %v1414
    %1629 = vmatprep.subr.mxu0 %v1413
    %1630 = vmatpush2.msra.mxu0 %v1412
    %1631 = vmatprep.subr.mxu0 %v1411
    %1632 = vmatpush2.msra.mxu0 %v1410
    %1633 = vmatprep.subr.mxu0 %v1409
    %1634 = vmatpush2.msra.mxu0 %v1408
    %1635 = vmatprep.subr.mxu0 %v1407
    %1636 = vmatpush2.msra.mxu0 %v1406
    %1637 = vmatprep.subr.mxu0 %v1405
    %1638 = vmatpush2.msra.mxu0 %v1404
    %1639 = vmatprep.subr.mxu0 %v1403
    %1640 = vmatpush2.msra.mxu0 %v1402
    %1641 = vmatprep.subr.mxu0 %v1401
    %1642 = vmatpush2.msra.mxu0 %v1400
    %1643 = vmatprep.subr.mxu0 %v1399
    %1644 = vmatpush2.msra.mxu0 %v1398
    %1645 = vmatprep.subr.mxu0 %v1397
    %1646 = vmatpush2.msra.mxu0 %v1396
    %1647 = vmatprep.subr.mxu0 %v1395
    %1648 = vmatpush2.msra.mxu0 %v1394
    %1649 = vmatprep.mubr.f32.mxu0 %v1294
    %1650 = vmatmul.mubr.f32.gmra.mxu0 %v1293
    %v1651 = vpop.f32.mrf.mxu0
    %v1652 = vadd.f32 %v1581, %v1651
    %v1653 = vpop.f32.mrf.mxu0
    %v1654 = vadd.f32 %v1583, %v1653
    %1655 = vdwg.mxu0
    %1656 = vmatprep.subr.mxu0 %v1457
    %1657 = vmatpush1.msra.mxu0 %v1456
    %1658 = vmatprep.subr.mxu0 %v1455
    %1659 = vmatpush1.msra.mxu0 %v1454
    %1660 = vmatprep.subr.mxu0 %v1453
    %1661 = vmatpush1.msra.mxu0 %v1452
    %1662 = vmatprep.subr.mxu0 %v1451
    %1663 = vmatpush1.msra.mxu0 %v1450
    %1664 = vmatprep.subr.mxu0 %v1449
    %1665 = vmatpush1.msra.mxu0 %v1448
    %1666 = vmatprep.subr.mxu0 %v1447
    %1667 = vmatpush1.msra.mxu0 %v1446
    %1668 = vmatprep.subr.mxu0 %v1445
    %1669 = vmatpush1.msra.mxu0 %v1444
    %1670 = vmatprep.subr.mxu0 %v1443
    %1671 = vmatpush1.msra.mxu0 %v1442
    %1672 = vmatprep.subr.mxu0 %v1441
    %1673 = vmatpush1.msra.mxu0 %v1440
    %1674 = vmatprep.subr.mxu0 %v1439
    %1675 = vmatpush1.msra.mxu0 %v1438
    %1676 = vmatprep.subr.mxu0 %v1437
    %1677 = vmatpush1.msra.mxu0 %v1436
    %1678 = vmatprep.subr.mxu0 %v1435
    %1679 = vmatpush1.msra.mxu0 %v1434
    %1680 = vmatprep.subr.mxu0 %v1433
    %1681 = vmatpush1.msra.mxu0 %v1432
    %1682 = vmatprep.subr.mxu0 %v1431
    %1683 = vmatpush1.msra.mxu0 %v1430
    %1684 = vmatprep.subr.mxu0 %v1429
    %1685 = vmatpush1.msra.mxu0 %v1428
    %1686 = vmatprep.subr.mxu0 %v1427
    %1687 = vmatpush1.msra.mxu0 %v1426
    %1688 = vmatprep.subr.mxu0 %v1489
    %1689 = vmatpush2.msra.mxu0 %v1488
    %1690 = vmatprep.subr.mxu0 %v1487
    %1691 = vmatpush2.msra.mxu0 %v1486
    %1692 = vmatprep.subr.mxu0 %v1485
    %1693 = vmatpush2.msra.mxu0 %v1484
    %1694 = vmatprep.subr.mxu0 %v1483
    %1695 = vmatpush2.msra.mxu0 %v1482
    %1696 = vmatprep.subr.mxu0 %v1481
    %1697 = vmatpush2.msra.mxu0 %v1480
    %1698 = vmatprep.subr.mxu0 %v1479
    %1699 = vmatpush2.msra.mxu0 %v1478
    %1700 = vmatprep.subr.mxu0 %v1477
    %1701 = vmatpush2.msra.mxu0 %v1476
    %1702 = vmatprep.subr.mxu0 %v1475
    %1703 = vmatpush2.msra.mxu0 %v1474
    %1704 = vmatprep.subr.mxu0 %v1473
    %1705 = vmatpush2.msra.mxu0 %v1472
    %1706 = vmatprep.subr.mxu0 %v1471
    %1707 = vmatpush2.msra.mxu0 %v1470
    %1708 = vmatprep.subr.mxu0 %v1469
    %1709 = vmatpush2.msra.mxu0 %v1468
    %1710 = vmatprep.subr.mxu0 %v1467
    %1711 = vmatpush2.msra.mxu0 %v1466
    %1712 = vmatprep.subr.mxu0 %v1465
    %1713 = vmatpush2.msra.mxu0 %v1464
    %1714 = vmatprep.subr.mxu0 %v1463
    %1715 = vmatpush2.msra.mxu0 %v1462
    %1716 = vmatprep.subr.mxu0 %v1461
    %1717 = vmatpush2.msra.mxu0 %v1460
    %1718 = vmatprep.subr.mxu0 %v1459
    %1719 = vmatpush2.msra.mxu0 %v1458
    %1720 = vmatprep.mubr.f32.mxu0 %v1296
    %1721 = vmatmul.mubr.f32.gmra.mxu0 %v1295
    %v1722 = vpop.f32.mrf.mxu0
    %v1723 = vadd.f32 %v1652, %v1722
    %v1724 = vpop.f32.mrf.mxu0
    %v1725 = vadd.f32 %v1654, %v1724
    %1726 = vdwg.mxu0
    %1727 = vmatprep.subr.mxu0 0.0
    %1728 = vmatpush1.msra.mxu0 0.0
    %1729 = vmatprep.subr.mxu0 0.0
    %1730 = vmatpush1.msra.mxu0 0.0
    %1731 = vmatprep.subr.mxu0 0.0
    %1732 = vmatpush1.msra.mxu0 0.0
    %1733 = vmatprep.subr.mxu0 0.0
    %1734 = vmatpush1.msra.mxu0 0.0
    %1735 = vmatprep.subr.mxu0 0.0
    %1736 = vmatpush1.msra.mxu0 0.0
    %1737 = vmatprep.subr.mxu0 0.0
    %1738 = vmatpush1.msra.mxu0 0.0
    %1739 = vmatprep.subr.mxu0 0.0
    %1740 = vmatpush1.msra.mxu0 0.0
    %1741 = vmatprep.subr.mxu0 0.0
    %1742 = vmatpush1.msra.mxu0 0.0
    %1743 = vmatprep.subr.mxu0 0.0
    %1744 = vmatpush1.msra.mxu0 0.0
    %1745 = vmatprep.subr.mxu0 0.0
    %1746 = vmatpush1.msra.mxu0 0.0
    %1747 = vmatprep.subr.mxu0 0.0
    %1748 = vmatpush1.msra.mxu0 0.0
    %1749 = vmatprep.subr.mxu0 0.0
    %1750 = vmatpush1.msra.mxu0 0.0
    %1751 = vmatprep.subr.mxu0 %v1497
    %1752 = vmatpush1.msra.mxu0 %v1496
    %1753 = vmatprep.subr.mxu0 %v1495
    %1754 = vmatpush1.msra.mxu0 %v1494
    %1755 = vmatprep.subr.mxu0 %v1493
    %1756 = vmatpush1.msra.mxu0 %v1492
    %1757 = vmatprep.subr.mxu0 %v1491
    %1758 = vmatpush1.msra.mxu0 %v1490
    %1759 = vmatprep.subr.mxu0 0.0
    %1760 = vmatpush2.msra.mxu0 0.0
    %1761 = vmatprep.subr.mxu0 0.0
    %1762 = vmatpush2.msra.mxu0 0.0
    %1763 = vmatprep.subr.mxu0 0.0
    %1764 = vmatpush2.msra.mxu0 0.0
    %1765 = vmatprep.subr.mxu0 0.0
    %1766 = vmatpush2.msra.mxu0 0.0
    %1767 = vmatprep.subr.mxu0 0.0
    %1768 = vmatpush2.msra.mxu0 0.0
    %1769 = vmatprep.subr.mxu0 0.0
    %1770 = vmatpush2.msra.mxu0 0.0
    %1771 = vmatprep.subr.mxu0 0.0
    %1772 = vmatpush2.msra.mxu0 0.0
    %1773 = vmatprep.subr.mxu0 0.0
    %1774 = vmatpush2.msra.mxu0 0.0
    %1775 = vmatprep.subr.mxu0 0.0
    %1776 = vmatpush2.msra.mxu0 0.0
    %1777 = vmatprep.subr.mxu0 0.0
    %1778 = vmatpush2.msra.mxu0 0.0
    %1779 = vmatprep.subr.mxu0 0.0
    %1780 = vmatpush2.msra.mxu0 0.0
    %1781 = vmatprep.subr.mxu0 0.0
    %1782 = vmatpush2.msra.mxu0 0.0
    %1783 = vmatprep.subr.mxu0 0.0
    %1784 = vmatpush2.msra.mxu0 0.0
    %1785 = vmatprep.subr.mxu0 0.0
    %1786 = vmatpush2.msra.mxu0 0.0
    %1787 = vmatprep.subr.mxu0 0.0
    %1788 = vmatpush2.msra.mxu0 0.0
    %1789 = vmatprep.subr.mxu0 0.0
    %1790 = vmatpush2.msra.mxu0 0.0
    %1791 = vmatprep.mubr.f32.mxu0 0.0
    %1792 = vmatmul.mubr.f32.gmra.mxu0 %v1512
    %v1793 = vpop.f32.mrf.mxu0
    %v1794 = vadd.f32 %v1723, %v1793
    %v1795 = vpop.f32.mrf.mxu0
    %v1796 = vadd.f32 %v1725, %v1795
    %1797 = vdwg.mxu0
    %v1798 = vmax.f32 %v1794, 0.0
    %v1799 = vmax.f32 %v1796, 0.0
    %v1800 = vld [vmem:[%s7] sm:$0xff]
    %v1801 = vld [vmem:[%s7 + $0x8] sm:$0xff]
    %v1802 = vld [vmem:[%s7 + $0x10] sm:$0xff]
    %v1803 = vld [vmem:[%s7 + $0x18] sm:$0xff]
    %v1804 = vld [vmem:[%s7 + $0x20] sm:$0xff]
    %v1805 = vld [vmem:[%s7 + $0x28] sm:$0xff]
    %v1806 = vld [vmem:[%s7 + $0x30] sm:$0xff]
    %v1807 = vld [vmem:[%s7 + $0x38] sm:$0xff]
    %v1808 = vld [vmem:[%s7 + $0x40] sm:$0xff]
    %v1809 = vld [vmem:[%s7 + $0x48] sm:$0xff]
    %v1810 = vld [vmem:[%s7 + $0x50] sm:$0xff]
    %v1811 = vld [vmem:[%s7 + $0x58] sm:$0xff]
    %v1812 = vld [vmem:[%s7 + $0x60] sm:$0xff]
    %v1813 = vld [vmem:[%s7 + $0x68] sm:$0xff]
    %v1814 = vld [vmem:[%s7 + $0x70] sm:$0xff]
    %v1815 = vld [vmem:[%s7 + $0x78] sm:$0xff]
    %v1816 = vld [vmem:[%s7 + $0x80] sm:$0xff]
    %v1817 = vld [vmem:[%s7 + $0x88] sm:$0xff]
    %v1818 = vld [vmem:[%s7 + $0x90] sm:$0xff]
    %v1819 = vld [vmem:[%s7 + $0x98] sm:$0xff]
    %v1820 = vld [vmem:[%s7 + $0xa0] sm:$0xff]
    %v1821 = vld [vmem:[%s7 + $0xa8] sm:$0xff]
    %v1822 = vld [vmem:[%s7 + $0xb0] sm:$0xff]
    %v1823 = vld [vmem:[%s7 + $0xb8] sm:$0xff]
    %v1824 = vld [vmem:[%s7 + $0xc0] sm:$0xff]
    %v1825 = vld [vmem:[%s7 + $0xc8] sm:$0xff]
    %v1826 = vld [vmem:[%s7 + $0xd0] sm:$0xff]
    %v1827 = vld [vmem:[%s7 + $0xd8] sm:$0xff]
    %v1828 = vld [vmem:[%s7 + $0xe0] sm:$0xff]
    %v1829 = vld [vmem:[%s7 + $0xe8] sm:$0xff]
    %v1830 = vld [vmem:[%s7 + $0xf0] sm:$0xff]
    %v1831 = vld [vmem:[%s7 + $0xf8] sm:$0xff]
    %v1832 = vld [vmem:[#allocation13] sm:$0x1]
    %v1834 = vlaneseq
    %v1835 = vshrl.u32 %v1834, 7
    %v1836 = vsub.s32 0, %v1835
    %v1837 = vrot.slane %v1832, %v1836
    %1839 = vmatprep.subr.mxu0 0.0
    %1840 = vmatpush1.msra.mxu0 %v1815
    %1841 = vmatprep.subr.mxu0 0.0
    %1842 = vmatpush1.msra.mxu0 %v1814
    %1843 = vmatprep.subr.mxu0 0.0
    %1844 = vmatpush1.msra.mxu0 %v1813
    %1845 = vmatprep.subr.mxu0 0.0
    %1846 = vmatpush1.msra.mxu0 %v1812
    %1847 = vmatprep.subr.mxu0 0.0
    %1848 = vmatpush1.msra.mxu0 %v1811
    %1849 = vmatprep.subr.mxu0 0.0
    %1850 = vmatpush1.msra.mxu0 %v1810
    %1851 = vmatprep.subr.mxu0 0.0
    %1852 = vmatpush1.msra.mxu0 %v1809
    %1853 = vmatprep.subr.mxu0 0.0
    %1854 = vmatpush1.msra.mxu0 %v1808
    %1855 = vmatprep.subr.mxu0 0.0
    %1856 = vmatpush1.msra.mxu0 %v1807
    %1857 = vmatprep.subr.mxu0 0.0
    %1858 = vmatpush1.msra.mxu0 %v1806
    %1859 = vmatprep.subr.mxu0 0.0
    %1860 = vmatpush1.msra.mxu0 %v1805
    %1861 = vmatprep.subr.mxu0 0.0
    %1862 = vmatpush1.msra.mxu0 %v1804
    %1863 = vmatprep.subr.mxu0 0.0
    %1864 = vmatpush1.msra.mxu0 %v1803
    %1865 = vmatprep.subr.mxu0 0.0
    %1866 = vmatpush1.msra.mxu0 %v1802
    %1867 = vmatprep.subr.mxu0 0.0
    %1868 = vmatpush1.msra.mxu0 %v1801
    %1869 = vmatprep.subr.mxu0 0.0
    %1870 = vmatpush1.msra.mxu0 %v1800
    %1871 = vmatprep.subr.mxu0 0.0
    %1872 = vmatpush2.msra.mxu0 %v1831
    %1873 = vmatprep.subr.mxu0 0.0
    %1874 = vmatpush2.msra.mxu0 %v1830
    %1875 = vmatprep.subr.mxu0 0.0
    %1876 = vmatpush2.msra.mxu0 %v1829
    %1877 = vmatprep.subr.mxu0 0.0
    %1878 = vmatpush2.msra.mxu0 %v1828
    %1879 = vmatprep.subr.mxu0 0.0
    %1880 = vmatpush2.msra.mxu0 %v1827
    %1881 = vmatprep.subr.mxu0 0.0
    %1882 = vmatpush2.msra.mxu0 %v1826
    %1883 = vmatprep.subr.mxu0 0.0
    %1884 = vmatpush2.msra.mxu0 %v1825
    %1885 = vmatprep.subr.mxu0 0.0
    %1886 = vmatpush2.msra.mxu0 %v1824
    %1887 = vmatprep.subr.mxu0 0.0
    %1888 = vmatpush2.msra.mxu0 %v1823
    %1889 = vmatprep.subr.mxu0 0.0
    %1890 = vmatpush2.msra.mxu0 %v1822
    %1891 = vmatprep.subr.mxu0 0.0
    %1892 = vmatpush2.msra.mxu0 %v1821
    %1893 = vmatprep.subr.mxu0 0.0
    %1894 = vmatpush2.msra.mxu0 %v1820
    %1895 = vmatprep.subr.mxu0 0.0
    %1896 = vmatpush2.msra.mxu0 %v1819
    %1897 = vmatprep.subr.mxu0 0.0
    %1898 = vmatpush2.msra.mxu0 %v1818
    %1899 = vmatprep.subr.mxu0 0.0
    %1900 = vmatpush2.msra.mxu0 %v1817
    %1901 = vmatprep.subr.mxu0 0.0
    %1902 = vmatpush2.msra.mxu0 %v1816
    %1903 = vmatprep.mubr.f32.mxu0 %v1799
    %1904 = vmatmul.mubr.f32.gmra.mxu0 %v1798
    %v1905 = vpop.f32.mrf.mxu0
    %v1906 = vadd.f32 %v1837, %v1905
    %v1907 = vpop.f32.mrf.mxu0
    %1908 = vdwg.mxu0
    %vm1909 = vcmask 205824
    %v1910 = vsel %vm1909, %v1906, -inf
    %1911 = vmax.xlane.f32.xlu0 %v1910
    %v1912 = vpop.xlane.xlu0 %1911
    %v1913 = vsub.f32 %v1906, %v1912
    %v1914 = vmul.f32 %v1913, 1.442695
    %v1915 = vpow.pop %v1914
    %v1916 = vsel %vm1909, %v1915, 0.0
    %1917 = vadd.xlane.f32.xlu0 %v1916
    %v1918 = vpop.xlane.xlu0 %1917
    %v1919 = vrcp.pop %v1918
    %v1920 = vmul.f32 %v1915, %v1919
    %1921 = vst.msk [vmem:[#allocation14] sm:$0x3] %vm1909, %v1920
    // Predicated region
    $region66: #{cnn_forward.1} parent=1 // pred_check
      _
    $region67: #{cnn_forward.1} parent=1 // pred_check_branch
      %1923 = sbr.rel (0) target = $region69
    $region68: #{cnn_forward.1} parent=1 // pred_region
      %s1925 = ssub.s32 32, 32
      %1926 = vsyncadd [#allocation4], %s1925
      %s1928 = sshll.u32 [#allocation14], 4
      %s1929 = int_to_ptr.vmem [resolvable:$true] %s1928
      %1931 = dma.vmem_to_hbm [thread:$0]  %s1929, 32, %s9, [#allocation4]
    $region69: #{cnn_forward.1} parent=1 // pred_fallthru
      _
    // Predicated region
    $region70: #{cnn_forward.1} parent=1 // pred_check
      _
    $region71: #{cnn_forward.1} parent=1 // pred_check_branch
      %1933 = sbr.rel (0) target = $region73
    $region72: #{cnn_forward.1} parent=1 // pred_region
      %1934 = dma.done [#allocation4], 32
    $region73: #{cnn_forward.1} parent=1 // pred_fallthru
      _
    %1935 = vsyncpa [#allocation3], 1
    %1936 = vsyncpa [#allocation6], 1
    %1937 = vsyncpa [#allocation9], 1
    %1938 = vsyncpa [#allocation12], 1
    %1939 = vsyncpa [#allocation4], 1

</llo_original>
